<compile_context>
chip_gen: v5e
topology: v5e:2x2
jax: 0.10.0
libtpu: 0.0.40
codegen_flags: <defaults>
</compile_context>

<pallas_src>
import math
import functools

import jax
import jax.numpy as jnp
from jax import lax
from jax.experimental import pallas as pl
from jax.experimental.pallas import tpu as pltpu


_NEG_BIG = -1e30  # finite "-inf": NaN-safe even if a row were fully masked


def _gelu_tanh(x):
    # Exact match of torch.nn.GELU('tanh')
    c = math.sqrt(2.0 / math.pi)
    return 0.5 * x * (1.0 + jnp.tanh(c * (x + 0.044715 * x * x * x)))


def _layernorm(x, w, b, eps=1e-5):
    mu = jnp.mean(x, axis=-1, keepdims=True)
    var = jnp.mean((x - mu) ** 2, axis=-1, keepdims=True)
    return (x - mu) * lax.rsqrt(var + eps) * w + b


def _derive_vmem_limit(frac=0.75):
    """Per-generation VMEM limit with headroom (v5e/v6e 128 MiB, v7x 64 MiB)."""
    try:
        cap = int(pltpu.get_tpu_info().vmem_capacity_bytes)
        return int(cap * frac)
    except Exception:
        return None  # fall back to the compiler default scoped limit


def block_kernel(x_ref,
                 ln1_w_ref, ln1_b_ref,
                 wqkv_ref, bqkv_ref,
                 wattp_ref, battp_ref,
                 ln2_w_ref, ln2_b_ref,
                 wfc_ref, bfc_ref,
                 wcp_ref, bcp_ref,
                 o_ref,
                 *, n_heads, q_tile, e_tile):
    f32 = jnp.float32
    bf16 = jnp.bfloat16

    x = x_ref[0]                                    # (T, C) f32
    T, C = x.shape
    H = n_heads
    hd = C // H
    E = wfc_ref.shape[1]
    scale = 1.0 / math.sqrt(hd)

    # ---- LayerNorm 1 (f32 statistics) ----
    h1 = _layernorm(x, ln1_w_ref[0], ln1_b_ref[0])

    # ---- fused qkv projection: one full-depth K=C matmul, bf16 in / f32 acc ----
    qkv = jnp.dot(h1.astype(bf16), wqkv_ref[...],
                  preferred_element_type=f32) + bqkv_ref[0]      # (T, 3C) f32

    # Head-batched operands via reshape + leading-dim transpose (no per-head
    # lane-slice stack).  1/sqrt(hd) folded into q once.
    def to_heads(t):                                # (T, C) -> (H, T, hd) bf16
        return jnp.transpose(t.astype(bf16).reshape(T, H, hd), (1, 0, 2))

    qh = to_heads(qkv[:, 0 * C:1 * C] * scale)
    kh = to_heads(qkv[:, 1 * C:2 * C])
    vh = to_heads(qkv[:, 2 * C:3 * C])

    # ---- causal attention, tiled over query rows (flash-lite, block skipping) ----
    out_tiles = []
    for q0 in range(0, T, q_tile):                  # static trip count
        tq = min(q_tile, T - q0)
        kv_end = q0 + tq                            # causal: skip blocks past diag
        qt = qh[:, q0:q0 + tq, :]
        ks = kh[:, :kv_end, :]
        vs = vh[:, :kv_end, :]

        s = jnp.einsum('hqd,hkd->hqk', qt, ks,
                       preferred_element_type=f32)  # (H, tq, kv_end) f32
        row = lax.broadcasted_iota(jnp.int32, (tq, kv_end), 0) + q0
        col = lax.broadcasted_iota(jnp.int32, (tq, kv_end), 1)
        s = jnp.where((col <= row)[None, :, :], s, _NEG_BIG)

        m = jnp.max(s, axis=-1, keepdims=True)      # softmax stats in f32
        p = jnp.exp(s - m)
        l = jnp.sum(p, axis=-1, keepdims=True)

        pv = jnp.einsum('hqk,hkd->hqd', p.astype(bf16), vs,
                        preferred_element_type=f32)              # (H, tq, hd)
        pv = pv * pl.reciprocal(l, approx=True)     # EUP reciprocal, no divide

        # Head-merge fused into ONE full-depth (K=C) output projection:
        # (H,tq,hd) -> head-major (tq,C), then a single (tq,C) @ (C,C).
        y = jnp.transpose(pv.astype(bf16), (1, 0, 2)).reshape(tq, C)
        out_tiles.append(jnp.dot(y, wattp_ref[...],
                                 preferred_element_type=f32))

    att_out = out_tiles[0] if len(out_tiles) == 1 else jnp.concatenate(out_tiles, 0)
    x1 = x + att_out + battp_ref[0]                 # residual in f32

    # ---- LayerNorm 2 + MLP (chunked over E so fc/g live ranges stay bounded) ----
    h2 = _layernorm(x1, ln2_w_ref[0], ln2_b_ref[0]).astype(bf16)
    bfc = bfc_ref[0]                                # (E,) f32
    mlp = jnp.zeros((T, C), f32)
    for e0 in range(0, E, e_tile):                  # static trip count
        e1 = min(e0 + e_tile, E)
        fc = jnp.dot(h2, wfc_ref[:, e0:e1],
                     preferred_element_type=f32) + bfc[e0:e1]
        g = _gelu_tanh(fc)   # f32 (bf16 GELU is a further win on v6e/v7x only)
        mlp = mlp + jnp.dot(g.astype(bf16), wcp_ref[e0:e1, :],
                            preferred_element_type=f32)

    o_ref[0] = x1 + mlp + bcp_ref[0]


def transformer_block(x, params, *, n_heads, q_tile=128, e_tile=512):
    B, T, C = x.shape
    E = 4 * C
    (ln1_w, ln1_b, wqkv, bqkv, wattp, battp,
     ln2_w, ln2_b, wfc, bfc, wcp, bcp) = params

    bf16 = jnp.bfloat16
    # Pre-cast matmul weights to bf16 (half DMA bytes / VMEM, MXU bf16 peak).
    # Biases / LN params stay f32.
    kparams = (ln1_w, ln1_b,
               wqkv.astype(bf16), bqkv,
               wattp.astype(bf16), battp,
               ln2_w, ln2_b,
               wfc.astype(bf16), bfc,
               wcp.astype(bf16), bcp)

    def full_spec(shape):
        nd = len(shape)
        # Constant index map -> the pipeline keeps this block resident across
        # the batch grid (no re-DMA per step).
        # TODO(synk): at very large C single-buffer these weights
        # (pipeline_mode=pl.Buffered(1) or persistent VMEM scratch) to halve
        # residency on v7x's 64 MiB VMEM.
        return pl.BlockSpec(shape, lambda b, _nd=nd: (0,) * _nd)

    in_specs = [
        pl.BlockSpec((1, T, C), lambda b: (b, 0, 0)),        # x
        full_spec((1, C)), full_spec((1, C)),                # ln1 w, b
        full_spec((C, 3 * C)), full_spec((1, 3 * C)),        # qkv W, b
        full_spec((C, C)), full_spec((1, C)),                # attn c_proj W, b
        full_spec((1, C)), full_spec((1, C)),                # ln2 w, b
        full_spec((C, E)), full_spec((1, E)),                # mlp c_fc W, b
        full_spec((E, C)), full_spec((1, C)),                # mlp c_proj W, b
    ]

    q_tile = max(1, min(q_tile, T))
    e_tile = max(1, min(e_tile, E))

    flops = B * (2 * T * C * 3 * C          # qkv projection
                 + 2 * T * T * C            # causal QK^T + PV (~half of dense)
                 + 2 * T * C * C            # attention out-projection
                 + 4 * T * C * E)           # MLP c_fc + c_proj
    transcendentals = B * (n_heads * T * T // 2 + T * E)   # softmax exp + gelu
    bytes_accessed = int(2 * x.size * x.dtype.itemsize
                         + sum(int(p.size) * p.dtype.itemsize for p in kparams))

    kernel = functools.partial(block_kernel, n_heads=n_heads,
                               q_tile=q_tile, e_tile=e_tile)

    cp_kwargs = dict(dimension_semantics=("parallel",))
    vmem_limit = _derive_vmem_limit()
    if vmem_limit is not None:
        cp_kwargs["vmem_limit_bytes"] = vmem_limit

    return pl.pallas_call(
        kernel,
        out_shape=jax.ShapeDtypeStruct((B, T, C), x.dtype),
        grid=(B,),
        in_specs=in_specs,
        out_specs=pl.BlockSpec((1, T, C), lambda b: (b, 0, 0)),
        compiler_params=pltpu.CompilerParams(**cp_kwargs),
        cost_estimate=pl.CostEstimate(
            flops=int(flops),
            transcendentals=int(transcendentals),
            bytes_accessed=bytes_accessed),
    )(x, *kparams)


def init_params(key, C):
    """Deterministic parameter init (shapes mirror the PyTorch module)."""
    E = 4 * C
    ks = jax.random.split(key, 6)
    s = 0.02
    ln1_w = jnp.ones((1, C), jnp.float32)
    ln1_b = jnp.zeros((1, C), jnp.float32)
    wqkv = s * jax.random.normal(ks[0], (C, 3 * C), jnp.float32)   # (in, out)
    bqkv = s * jax.random.normal(ks[1], (1, 3 * C), jnp.float32)
    wattp = s * jax.random.normal(ks[2], (C, C), jnp.float32)
    battp = jnp.zeros((1, C), jnp.float32)
    ln2_w = jnp.ones((1, C), jnp.float32)
    ln2_b = jnp.zeros((1, C), jnp.float32)
    wfc = s * jax.random.normal(ks[3], (C, E), jnp.float32)
    bfc = s * jax.random.normal(ks[4], (1, E), jnp.float32)
    wcp = s * jax.random.normal(ks[5], (E, C), jnp.float32)
    bcp = jnp.zeros((1, C), jnp.float32)
    return (ln1_w, ln1_b, wqkv, bqkv, wattp, battp,
            ln2_w, ln2_b, wfc, bfc, wcp, bcp)


def reference_block(x, params, *, n_heads):
    """Pure-JAX f32 reference for correctness checking."""
    (ln1_w, ln1_b, wqkv, bqkv, wattp, battp,
     ln2_w, ln2_b, wfc, bfc, wcp, bcp) = params
    B, T, C = x.shape
    hd = C // n_heads

    def ln(v, w, b):
        mu = jnp.mean(v, axis=-1, keepdims=True)
        var = jnp.mean((v - mu) ** 2, axis=-1, keepdims=True)
        return (v - mu) / jnp.sqrt(var + 1e-5) * w[0] + b[0]

    h = ln(x, ln1_w, ln1_b)
    qkv = h @ wqkv + bqkv[0]
    q, k, v = jnp.split(qkv, 3, axis=-1)
    q = q.reshape(B, T, n_heads, hd).transpose(0, 2, 1, 3)
    k = k.reshape(B, T, n_heads, hd).transpose(0, 2, 1, 3)
    v = v.reshape(B, T, n_heads, hd).transpose(0, 2, 1, 3)
    att = (q @ k.transpose(0, 1, 3, 2)) / math.sqrt(hd)
    mask = jnp.tril(jnp.ones((T, T), bool))
    att = jnp.where(mask[None, None], att, -jnp.inf)
    att = jax.nn.softmax(att, axis=-1)
    y = (att @ v).transpose(0, 2, 1, 3).reshape(B, T, C)
    y = y @ wattp + battp[0]
    x1 = x + y
    h2 = ln(x1, ln2_w, ln2_b)
    g = _gelu_tanh(h2 @ wfc + bfc[0])
    return x1 + g @ wcp + bcp[0]


if __name__ == "__main__":
    B, T, C, n_heads = 2, 8, 32, 4   # block_size = T = 8

    key = jax.random.PRNGKey(0)
    kx, kp = jax.random.split(key)
    x = jax.random.normal(kx, (B, T, C), jnp.float32)
    params = init_params(kp, C)

    out = transformer_block(x, params, n_heads=n_heads)
    out = jax.block_until_ready(out)

    ref = reference_block(x, params, n_heads=n_heads)
    assert out.shape == (B, T, C)
    # bf16 MXU operands + approx reciprocal => loosen tolerance vs f32 reference.
    assert jnp.allclose(out, ref, atol=2e-2, rtol=2e-2), "mismatch vs f32 reference"

    print("KERNEL_OK")
</pallas_src>

<mosaic_0001>
module attributes {stable_mosaic.version = 11 : i64} {
  func.func @block_kernel(%arg0: i32, %arg1: memref<1x8x32xf32, #tpu.memory_space<vmem>>, %arg2: memref<1x32xf32, #tpu.memory_space<vmem>>, %arg3: memref<1x32xf32, #tpu.memory_space<vmem>>, %arg4: memref<32x96xbf16, #tpu.memory_space<vmem>>, %arg5: memref<1x96xf32, #tpu.memory_space<vmem>>, %arg6: memref<32x32xbf16, #tpu.memory_space<vmem>>, %arg7: memref<1x32xf32, #tpu.memory_space<vmem>>, %arg8: memref<1x32xf32, #tpu.memory_space<vmem>>, %arg9: memref<1x32xf32, #tpu.memory_space<vmem>>, %arg10: memref<32x128xbf16, #tpu.memory_space<vmem>>, %arg11: memref<1x128xf32, #tpu.memory_space<vmem>>, %arg12: memref<128x32xbf16, #tpu.memory_space<vmem>>, %arg13: memref<1x32xf32, #tpu.memory_space<vmem>>, %arg14: memref<1x8x32xf32, #tpu.memory_space<vmem>>) attributes {dimension_semantics = [#tpu.dimension_semantics<parallel>], iteration_bounds = array<i64: 2>, scalar_prefetch = 0 : i64, scratch_operands = 0 : i64, tpu.core_type = #tpu.core_type<tc>, window_params = [{transform_indices = @transform_0, window_bounds = array<i64: 1, 8, 32>}, {pipeline_mode = #tpu.pipeline_mode<synchronous>, transform_indices = @transform_1, window_bounds = array<i64: 1, 32>}, {pipeline_mode = #tpu.pipeline_mode<synchronous>, transform_indices = @transform_2, window_bounds = array<i64: 1, 32>}, {pipeline_mode = #tpu.pipeline_mode<synchronous>, transform_indices = @transform_3, window_bounds = array<i64: 32, 96>}, {pipeline_mode = #tpu.pipeline_mode<synchronous>, transform_indices = @transform_4, window_bounds = array<i64: 1, 96>}, {pipeline_mode = #tpu.pipeline_mode<synchronous>, transform_indices = @transform_5, window_bounds = array<i64: 32, 32>}, {pipeline_mode = #tpu.pipeline_mode<synchronous>, transform_indices = @transform_6, window_bounds = array<i64: 1, 32>}, {pipeline_mode = #tpu.pipeline_mode<synchronous>, transform_indices = @transform_7, window_bounds = array<i64: 1, 32>}, {pipeline_mode = #tpu.pipeline_mode<synchronous>, transform_indices = @transform_8, window_bounds = array<i64: 1, 32>}, {pipeline_mode = #tpu.pipeline_mode<synchronous>, transform_indices = @transform_9, window_bounds = array<i64: 32, 128>}, {pipeline_mode = #tpu.pipeline_mode<synchronous>, transform_indices = @transform_10, window_bounds = array<i64: 1, 128>}, {pipeline_mode = #tpu.pipeline_mode<synchronous>, transform_indices = @transform_11, window_bounds = array<i64: 128, 32>}, {pipeline_mode = #tpu.pipeline_mode<synchronous>, transform_indices = @transform_12, window_bounds = array<i64: 1, 32>}, {transform_indices = @transform_13, window_bounds = array<i64: 1, 8, 32>}]} {
    %c0 = arith.constant 0 : index
    %c0_0 = arith.constant 0 : index
    %c0_1 = arith.constant 0 : index
    %0 = vector.load %arg1[%c0, %c0_0, %c0_1] : memref<1x8x32xf32, #tpu.memory_space<vmem>>, vector<1x8x32xf32>
    %1 = vector.shape_cast %0 : vector<1x8x32xf32> to vector<8x32xf32>
    %c0_2 = arith.constant 0 : index
    %c0_3 = arith.constant 0 : index
    %2 = vector.load %arg2[%c0_2, %c0_3] : memref<1x32xf32, #tpu.memory_space<vmem>>, vector<1x32xf32>
    %3 = vector.shape_cast %2 : vector<1x32xf32> to vector<32xf32>
    %c0_4 = arith.constant 0 : index
    %c0_5 = arith.constant 0 : index
    %4 = vector.load %arg3[%c0_4, %c0_5] : memref<1x32xf32, #tpu.memory_space<vmem>>, vector<1x32xf32>
    %5 = vector.shape_cast %4 : vector<1x32xf32> to vector<32xf32>
    %cst = arith.constant dense<0.000000e+00> : vector<8xf32>
    %6 = vector.multi_reduction <add>, %1, %cst [1] : vector<8x32xf32> to vector<8xf32>
    %7 = vector.shape_cast %6 : vector<8xf32> to vector<8x1xf32>
    %cst_6 = arith.constant 3.200000e+01 : f32
    %8 = vector.broadcast %cst_6 : f32 to vector<8x1xf32>
    %9 = arith.divf %7, %8 : vector<8x1xf32>
    %10 = vector.broadcast %9 : vector<8x1xf32> to vector<8x32xf32>
    %11 = arith.subf %1, %10 : vector<8x32xf32>
    %12 = arith.mulf %11, %11 : vector<8x32xf32>
    %cst_7 = arith.constant dense<0.000000e+00> : vector<8xf32>
    %13 = vector.multi_reduction <add>, %12, %cst_7 [1] : vector<8x32xf32> to vector<8xf32>
    %14 = vector.shape_cast %13 : vector<8xf32> to vector<8x1xf32>
    %cst_8 = arith.constant 3.200000e+01 : f32
    %15 = vector.broadcast %cst_8 : f32 to vector<8x1xf32>
    %16 = arith.divf %14, %15 : vector<8x1xf32>
    %17 = vector.broadcast %9 : vector<8x1xf32> to vector<8x32xf32>
    %18 = arith.subf %1, %17 : vector<8x32xf32>
    %cst_9 = arith.constant 9.99999974E-6 : f32
    %19 = vector.broadcast %cst_9 : f32 to vector<8x1xf32>
    %20 = arith.addf %16, %19 : vector<8x1xf32>
    %21 = math.rsqrt %20 : vector<8x1xf32>
    %22 = vector.broadcast %21 : vector<8x1xf32> to vector<8x32xf32>
    %23 = arith.mulf %18, %22 : vector<8x32xf32>
    %24 = vector.shape_cast %3 : vector<32xf32> to vector<1x32xf32>
    %25 = vector.broadcast %24 : vector<1x32xf32> to vector<8x32xf32>
    %26 = arith.mulf %23, %25 : vector<8x32xf32>
    %27 = vector.shape_cast %5 : vector<32xf32> to vector<1x32xf32>
    %28 = vector.broadcast %27 : vector<1x32xf32> to vector<8x32xf32>
    %29 = arith.addf %26, %28 : vector<8x32xf32>
    %30 = arith.truncf %29 : vector<8x32xf32> to vector<8x32xbf16>
    %c0_10 = arith.constant 0 : index
    %c0_11 = arith.constant 0 : index
    %31 = vector.load %arg4[%c0_10, %c0_11] : memref<32x96xbf16, #tpu.memory_space<vmem>>, vector<32x96xbf16>
    %cst_12 = arith.constant dense<0.000000e+00> : vector<8x96xf32>
    %32 = tpu.matmul %30, %31, %cst_12 {dimension_numbers = #tpu.dot_dimension_numbers<[1], [0], [0], [1], [0, 0, 1, 1], [], []>} : vector<8x32xbf16>, vector<32x96xbf16>, vector<8x96xf32> -> vector<8x96xf32>
    %c0_13 = arith.constant 0 : index
    %c0_14 = arith.constant 0 : index
    %33 = vector.load %arg5[%c0_13, %c0_14] : memref<1x96xf32, #tpu.memory_space<vmem>>, vector<1x96xf32>
    %34 = vector.shape_cast %33 : vector<1x96xf32> to vector<96xf32>
    %35 = vector.shape_cast %34 : vector<96xf32> to vector<1x96xf32>
    %36 = vector.broadcast %35 : vector<1x96xf32> to vector<8x96xf32>
    %37 = arith.addf %32, %36 : vector<8x96xf32>
    %38 = vector.extract_strided_slice %37 {offsets = [0, 0], sizes = [8, 32], strides = [1, 1]} : vector<8x96xf32> to vector<8x32xf32>
    %cst_15 = arith.constant 0.353553385 : f32
    %39 = vector.broadcast %cst_15 : f32 to vector<8x32xf32>
    %40 = arith.mulf %38, %39 : vector<8x32xf32>
    %41 = arith.truncf %40 : vector<8x32xf32> to vector<8x32xbf16>
    %42 = vector.shape_cast %41 : vector<8x32xbf16> to vector<8x4x8xbf16>
    %43 = tpu.transpose %42, [1, 0, 2] : vector<8x4x8xbf16> -> vector<4x8x8xbf16>
    %44 = vector.extract_strided_slice %37 {offsets = [0, 32], sizes = [8, 32], strides = [1, 1]} : vector<8x96xf32> to vector<8x32xf32>
    %45 = arith.truncf %44 : vector<8x32xf32> to vector<8x32xbf16>
    %46 = vector.shape_cast %45 : vector<8x32xbf16> to vector<8x4x8xbf16>
    %47 = tpu.transpose %46, [1, 0, 2] : vector<8x4x8xbf16> -> vector<4x8x8xbf16>
    %48 = vector.extract_strided_slice %37 {offsets = [0, 64], sizes = [8, 32], strides = [1, 1]} : vector<8x96xf32> to vector<8x32xf32>
    %49 = arith.truncf %48 : vector<8x32xf32> to vector<8x32xbf16>
    %50 = vector.shape_cast %49 : vector<8x32xbf16> to vector<8x4x8xbf16>
    %51 = tpu.transpose %50, [1, 0, 2] : vector<8x4x8xbf16> -> vector<4x8x8xbf16>
    "tpu.trace_start"() <{level = 10 : i32, message = "hqd,hkd->hqk"}> : () -> ()
    %cst_16 = arith.constant dense<0.000000e+00> : vector<4x8x8xf32>
    %52 = tpu.matmul %43, %47, %cst_16 {dimension_numbers = #tpu.dot_dimension_numbers<[2], [2], [1], [1], [0, 0, 0, 1, 1, 1], [0], [0]>} : vector<4x8x8xbf16>, vector<4x8x8xbf16>, vector<4x8x8xf32> -> vector<4x8x8xf32>
    "tpu.trace_stop"() : () -> ()
    %53 = tpu.iota {dimensions = array<i32: 0>} : vector<8x8xi32>
    %c0_i32 = arith.constant 0 : i32
    %54 = vector.broadcast %c0_i32 : i32 to vector<8x8xi32>
    %55 = arith.addi %53, %54 : vector<8x8xi32>
    %56 = tpu.iota {dimensions = array<i32: 1>} : vector<8x8xi32>
    %57 = arith.cmpi sle, %56, %55 : vector<8x8xi32>
    %58 = vector.shape_cast %57 : vector<8x8xi1> to vector<1x8x8xi1>
    %cst_17 = arith.constant -1.000000e+30 : f32
    %59 = vector.shape_cast %58 : vector<1x8x8xi1> to vector<1x8x8xi1>
    %60 = vector.broadcast %59 : vector<1x8x8xi1> to vector<4x8x8xi1>
    %61 = vector.broadcast %cst_17 : f32 to vector<4x8x8xf32>
    %62 = arith.select %60, %52, %61 : vector<4x8x8xi1>, vector<4x8x8xf32>
    %cst_18 = arith.constant dense<0xFF800000> : vector<4x8xf32>
    %63 = vector.multi_reduction <maximumf>, %62, %cst_18 [2] : vector<4x8x8xf32> to vector<4x8xf32>
    %64 = vector.shape_cast %63 : vector<4x8xf32> to vector<4x8x1xf32>
    %65 = vector.broadcast %64 : vector<4x8x1xf32> to vector<4x8x8xf32>
    %66 = arith.subf %62, %65 : vector<4x8x8xf32>
    %67 = math.exp %66 : vector<4x8x8xf32>
    %cst_19 = arith.constant dense<0.000000e+00> : vector<4x8xf32>
    %68 = vector.multi_reduction <add>, %67, %cst_19 [2] : vector<4x8x8xf32> to vector<4x8xf32>
    %69 = vector.shape_cast %68 : vector<4x8xf32> to vector<4x8x1xf32>
    %70 = arith.truncf %67 : vector<4x8x8xf32> to vector<4x8x8xbf16>
    "tpu.trace_start"() <{level = 10 : i32, message = "hqk,hkd->hqd"}> : () -> ()
    %cst_20 = arith.constant dense<0.000000e+00> : vector<4x8x8xf32>
    %71 = tpu.matmul %70, %51, %cst_20 {dimension_numbers = #tpu.dot_dimension_numbers<[2], [1], [1], [2], [0, 0, 0, 1, 1, 2], [0], [0]>} : vector<4x8x8xbf16>, vector<4x8x8xbf16>, vector<4x8x8xf32> -> vector<4x8x8xf32>
    "tpu.trace_stop"() : () -> ()
    %72 = tpu.reciprocal %69 {approx = true} : vector<4x8x1xf32> -> vector<4x8x1xf32>
    %73 = vector.broadcast %72 : vector<4x8x1xf32> to vector<4x8x8xf32>
    %74 = arith.mulf %71, %73 : vector<4x8x8xf32>
    %75 = arith.truncf %74 : vector<4x8x8xf32> to vector<4x8x8xbf16>
    %76 = tpu.transpose %75, [1, 0, 2] : vector<4x8x8xbf16> -> vector<8x4x8xbf16>
    %77 = vector.shape_cast %76 : vector<8x4x8xbf16> to vector<8x32xbf16>
    %c0_21 = arith.constant 0 : index
    %c0_22 = arith.constant 0 : index
    %78 = vector.load %arg6[%c0_21, %c0_22] : memref<32x32xbf16, #tpu.memory_space<vmem>>, vector<32x32xbf16>
    %cst_23 = arith.constant dense<0.000000e+00> : vector<8x32xf32>
    %79 = tpu.matmul %77, %78, %cst_23 {dimension_numbers = #tpu.dot_dimension_numbers<[1], [0], [0], [1], [0, 0, 1, 1], [], []>} : vector<8x32xbf16>, vector<32x32xbf16>, vector<8x32xf32> -> vector<8x32xf32>
    %80 = arith.addf %1, %79 : vector<8x32xf32>
    %c0_24 = arith.constant 0 : index
    %c0_25 = arith.constant 0 : index
    %81 = vector.load %arg7[%c0_24, %c0_25] : memref<1x32xf32, #tpu.memory_space<vmem>>, vector<1x32xf32>
    %82 = vector.shape_cast %81 : vector<1x32xf32> to vector<32xf32>
    %83 = vector.shape_cast %82 : vector<32xf32> to vector<1x32xf32>
    %84 = vector.broadcast %83 : vector<1x32xf32> to vector<8x32xf32>
    %85 = arith.addf %80, %84 : vector<8x32xf32>
    %c0_26 = arith.constant 0 : index
    %c0_27 = arith.constant 0 : index
    %86 = vector.load %arg8[%c0_26, %c0_27] : memref<1x32xf32, #tpu.memory_space<vmem>>, vector<1x32xf32>
    %87 = vector.shape_cast %86 : vector<1x32xf32> to vector<32xf32>
    %c0_28 = arith.constant 0 : index
    %c0_29 = arith.constant 0 : index
    %88 = vector.load %arg9[%c0_28, %c0_29] : memref<1x32xf32, #tpu.memory_space<vmem>>, vector<1x32xf32>
    %89 = vector.shape_cast %88 : vector<1x32xf32> to vector<32xf32>
    %cst_30 = arith.constant dense<0.000000e+00> : vector<8xf32>
    %90 = vector.multi_reduction <add>, %85, %cst_30 [1] : vector<8x32xf32> to vector<8xf32>
    %91 = vector.shape_cast %90 : vector<8xf32> to vector<8x1xf32>
    %cst_31 = arith.constant 3.200000e+01 : f32
    %92 = vector.broadcast %cst_31 : f32 to vector<8x1xf32>
    %93 = arith.divf %91, %92 : vector<8x1xf32>
    %94 = vector.broadcast %93 : vector<8x1xf32> to vector<8x32xf32>
    %95 = arith.subf %85, %94 : vector<8x32xf32>
    %96 = arith.mulf %95, %95 : vector<8x32xf32>
    %cst_32 = arith.constant dense<0.000000e+00> : vector<8xf32>
    %97 = vector.multi_reduction <add>, %96, %cst_32 [1] : vector<8x32xf32> to vector<8xf32>
    %98 = vector.shape_cast %97 : vector<8xf32> to vector<8x1xf32>
    %cst_33 = arith.constant 3.200000e+01 : f32
    %99 = vector.broadcast %cst_33 : f32 to vector<8x1xf32>
    %100 = arith.divf %98, %99 : vector<8x1xf32>
    %101 = vector.broadcast %93 : vector<8x1xf32> to vector<8x32xf32>
    %102 = arith.subf %85, %101 : vector<8x32xf32>
    %cst_34 = arith.constant 9.99999974E-6 : f32
    %103 = vector.broadcast %cst_34 : f32 to vector<8x1xf32>
    %104 = arith.addf %100, %103 : vector<8x1xf32>
    %105 = math.rsqrt %104 : vector<8x1xf32>
    %106 = vector.broadcast %105 : vector<8x1xf32> to vector<8x32xf32>
    %107 = arith.mulf %102, %106 : vector<8x32xf32>
    %108 = vector.shape_cast %87 : vector<32xf32> to vector<1x32xf32>
    %109 = vector.broadcast %108 : vector<1x32xf32> to vector<8x32xf32>
    %110 = arith.mulf %107, %109 : vector<8x32xf32>
    %111 = vector.shape_cast %89 : vector<32xf32> to vector<1x32xf32>
    %112 = vector.broadcast %111 : vector<1x32xf32> to vector<8x32xf32>
    %113 = arith.addf %110, %112 : vector<8x32xf32>
    %114 = arith.truncf %113 : vector<8x32xf32> to vector<8x32xbf16>
    %c0_35 = arith.constant 0 : index
    %c0_36 = arith.constant 0 : index
    %115 = vector.load %arg11[%c0_35, %c0_36] : memref<1x128xf32, #tpu.memory_space<vmem>>, vector<1x128xf32>
    %116 = vector.shape_cast %115 : vector<1x128xf32> to vector<128xf32>
    %cst_37 = arith.constant 0.000000e+00 : f32
    %117 = vector.broadcast %cst_37 : f32 to vector<8x32xf32>
    %c0_38 = arith.constant 0 : index
    %c0_39 = arith.constant 0 : index
    %118 = vector.load %arg10[%c0_38, %c0_39] : memref<32x128xbf16, #tpu.memory_space<vmem>>, vector<32x128xbf16>
    %cst_40 = arith.constant dense<0.000000e+00> : vector<8x128xf32>
    %119 = tpu.matmul %114, %118, %cst_40 {dimension_numbers = #tpu.dot_dimension_numbers<[1], [0], [0], [1], [0, 0, 1, 1], [], []>} : vector<8x32xbf16>, vector<32x128xbf16>, vector<8x128xf32> -> vector<8x128xf32>
    %120 = vector.shape_cast %116 : vector<128xf32> to vector<1x128xf32>
    %121 = vector.broadcast %120 : vector<1x128xf32> to vector<8x128xf32>
    %122 = arith.addf %119, %121 : vector<8x128xf32>
    %cst_41 = arith.constant 5.000000e-01 : f32
    %123 = vector.broadcast %cst_41 : f32 to vector<8x128xf32>
    %124 = arith.mulf %123, %122 : vector<8x128xf32>
    %cst_42 = arith.constant 4.471500e-02 : f32
    %125 = vector.broadcast %cst_42 : f32 to vector<8x128xf32>
    %126 = arith.mulf %125, %122 : vector<8x128xf32>
    %127 = arith.mulf %126, %122 : vector<8x128xf32>
    %128 = arith.mulf %127, %122 : vector<8x128xf32>
    %129 = arith.addf %122, %128 : vector<8x128xf32>
    %cst_43 = arith.constant 0.797884583 : f32
    %130 = vector.broadcast %cst_43 : f32 to vector<8x128xf32>
    %131 = arith.mulf %130, %129 : vector<8x128xf32>
    %132 = math.tanh %131 : vector<8x128xf32>
    %cst_44 = arith.constant 1.000000e+00 : f32
    %133 = vector.broadcast %cst_44 : f32 to vector<8x128xf32>
    %134 = arith.addf %133, %132 : vector<8x128xf32>
    %135 = arith.mulf %124, %134 : vector<8x128xf32>
    %136 = arith.truncf %135 : vector<8x128xf32> to vector<8x128xbf16>
    %c0_45 = arith.constant 0 : index
    %c0_46 = arith.constant 0 : index
    %137 = vector.load %arg12[%c0_45, %c0_46] : memref<128x32xbf16, #tpu.memory_space<vmem>>, vector<128x32xbf16>
    %cst_47 = arith.constant dense<0.000000e+00> : vector<8x32xf32>
    %138 = tpu.matmul %136, %137, %cst_47 {dimension_numbers = #tpu.dot_dimension_numbers<[1], [0], [0], [1], [0, 0, 1, 1], [], []>} : vector<8x128xbf16>, vector<128x32xbf16>, vector<8x32xf32> -> vector<8x32xf32>
    %139 = arith.addf %117, %138 : vector<8x32xf32>
    %140 = arith.addf %85, %139 : vector<8x32xf32>
    %c0_48 = arith.constant 0 : index
    %c0_49 = arith.constant 0 : index
    %141 = vector.load %arg13[%c0_48, %c0_49] : memref<1x32xf32, #tpu.memory_space<vmem>>, vector<1x32xf32>
    %142 = vector.shape_cast %141 : vector<1x32xf32> to vector<32xf32>
    %143 = vector.shape_cast %142 : vector<32xf32> to vector<1x32xf32>
    %144 = vector.broadcast %143 : vector<1x32xf32> to vector<8x32xf32>
    %145 = arith.addf %140, %144 : vector<8x32xf32>
    %c0_50 = arith.constant 0 : index
    %c0_51 = arith.constant 0 : index
    %c0_52 = arith.constant 0 : index
    %146 = vector.load %arg14[%c0_50, %c0_51, %c0_52] : memref<1x8x32xf32, #tpu.memory_space<vmem>>, vector<1x8x32xf32>
    %147 = vector.shape_cast %146 : vector<1x8x32xf32> to vector<8x32xf32>
    %148 = vector.shape_cast %145 : vector<8x32xf32> to vector<1x8x32xf32>
    tpu.vector_store %arg14[%c0_50, %c0_51, %c0_52], %148 {strides = array<i32>} : memref<1x8x32xf32, #tpu.memory_space<vmem>>, vector<1x8x32xf32>,
    return
  }
  func.func @transform_0(%arg0: i32) -> (i32, i32, i32) {
    %c0_i32 = arith.constant 0 : i32
    %c0_i32_0 = arith.constant 0 : i32
    %c0_i32_1 = arith.constant 0 : i32
    return %arg0, %c0_i32, %c0_i32_0 : i32, i32, i32
  }
  func.func @transform_1(%arg0: i32) -> (i32, i32) {
    %c0_i32 = arith.constant 0 : i32
    %c0_i32_0 = arith.constant 0 : i32
    %c0_i32_1 = arith.constant 0 : i32
    return %c0_i32, %c0_i32_0 : i32, i32
  }
  func.func @transform_2(%arg0: i32) -> (i32, i32) {
    %c0_i32 = arith.constant 0 : i32
    %c0_i32_0 = arith.constant 0 : i32
    %c0_i32_1 = arith.constant 0 : i32
    return %c0_i32, %c0_i32_0 : i32, i32
  }
  func.func @transform_3(%arg0: i32) -> (i32, i32) {
    %c0_i32 = arith.constant 0 : i32
    %c0_i32_0 = arith.constant 0 : i32
    %c0_i32_1 = arith.constant 0 : i32
    return %c0_i32, %c0_i32_0 : i32, i32
  }
  func.func @transform_4(%arg0: i32) -> (i32, i32) {
    %c0_i32 = arith.constant 0 : i32
    %c0_i32_0 = arith.constant 0 : i32
    %c0_i32_1 = arith.constant 0 : i32
    return %c0_i32, %c0_i32_0 : i32, i32
  }
  func.func @transform_5(%arg0: i32) -> (i32, i32) {
    %c0_i32 = arith.constant 0 : i32
    %c0_i32_0 = arith.constant 0 : i32
    %c0_i32_1 = arith.constant 0 : i32
    return %c0_i32, %c0_i32_0 : i32, i32
  }
  func.func @transform_6(%arg0: i32) -> (i32, i32) {
    %c0_i32 = arith.constant 0 : i32
    %c0_i32_0 = arith.constant 0 : i32
    %c0_i32_1 = arith.constant 0 : i32
    return %c0_i32, %c0_i32_0 : i32, i32
  }
  func.func @transform_7(%arg0: i32) -> (i32, i32) {
    %c0_i32 = arith.constant 0 : i32
    %c0_i32_0 = arith.constant 0 : i32
    %c0_i32_1 = arith.constant 0 : i32
    return %c0_i32, %c0_i32_0 : i32, i32
  }
  func.func @transform_8(%arg0: i32) -> (i32, i32) {
    %c0_i32 = arith.constant 0 : i32
    %c0_i32_0 = arith.constant 0 : i32
    %c0_i32_1 = arith.constant 0 : i32
    return %c0_i32, %c0_i32_0 : i32, i32
  }
  func.func @transform_9(%arg0: i32) -> (i32, i32) {
    %c0_i32 = arith.constant 0 : i32
    %c0_i32_0 = arith.constant 0 : i32
    %c0_i32_1 = arith.constant 0 : i32
    return %c0_i32, %c0_i32_0 : i32, i32
  }
  func.func @transform_10(%arg0: i32) -> (i32, i32) {
    %c0_i32 = arith.constant 0 : i32
    %c0_i32_0 = arith.constant 0 : i32
    %c0_i32_1 = arith.constant 0 : i32
    return %c0_i32, %c0_i32_0 : i32, i32
  }
  func.func @transform_11(%arg0: i32) -> (i32, i32) {
    %c0_i32 = arith.constant 0 : i32
    %c0_i32_0 = arith.constant 0 : i32
    %c0_i32_1 = arith.constant 0 : i32
    return %c0_i32, %c0_i32_0 : i32, i32
  }
  func.func @transform_12(%arg0: i32) -> (i32, i32) {
    %c0_i32 = arith.constant 0 : i32
    %c0_i32_0 = arith.constant 0 : i32
    %c0_i32_1 = arith.constant 0 : i32
    return %c0_i32, %c0_i32_0 : i32, i32
  }
  func.func @transform_13(%arg0: i32) -> (i32, i32, i32) {
    %c0_i32 = arith.constant 0 : i32
    %c0_i32_0 = arith.constant 0 : i32
    %c0_i32_1 = arith.constant 0 : i32
    return %arg0, %c0_i32, %c0_i32_0 : i32, i32, i32
  }
}

</mosaic_0001>

<llo_original>
// kernel: tpu_custom_call.1
$region0: #{tpu_custom_call.1}
  #allocation0 [shape = 'u32[]', space=smem, size = 0x4, offset = 0x4, fixed_abs, tag = 'smem constant byte address 0x4 - core index']
  #allocation1 [shape = 'u32[72,128]{1,0:T(1,128)}', space=vmem, size = 0x9000, scoped, tag = 'internal scratch']
  %s0 = inlined_call_operand.vmem [shape: f32[2,8,32], index: 0, kind: input, shape index: {}]
  %s1 = inlined_call_operand.vmem [shape: f32[1,32], index: 1, kind: input, shape index: {}]
  %s2 = inlined_call_operand.vmem [shape: f32[1,32], index: 2, kind: input, shape index: {}]
  %s3 = inlined_call_operand.vmem [shape: bf16[32,96], index: 3, kind: input, shape index: {}]
  %s4 = inlined_call_operand.vmem [shape: f32[1,96], index: 4, kind: input, shape index: {}]
  %s5 = inlined_call_operand.vmem [shape: bf16[32,32], index: 5, kind: input, shape index: {}]
  %s6 = inlined_call_operand.vmem [shape: f32[1,32], index: 6, kind: input, shape index: {}]
  %s7 = inlined_call_operand.vmem [shape: f32[1,32], index: 7, kind: input, shape index: {}]
  %s8 = inlined_call_operand.vmem [shape: f32[1,32], index: 8, kind: input, shape index: {}]
  %s9 = inlined_call_operand.vmem [shape: bf16[32,128], index: 9, kind: input, shape index: {}]
  %s10 = inlined_call_operand.vmem [shape: f32[1,128], index: 10, kind: input, shape index: {}]
  %s11 = inlined_call_operand.vmem [shape: bf16[128,32], index: 11, kind: input, shape index: {}]
  %s12 = inlined_call_operand.vmem [shape: f32[1,32], index: 12, kind: input, shape index: {}]
  %s13 = inlined_call_operand.hbm [shape: f32[2,8,32], index: 13, kind: output, shape index: {}]
  %s14 = sld [smem:[#allocation0]]
  $region85: #{tpu_custom_call.1} parent=0
    _
  %s16 = ssub.s32 1, %s14
  %s17 = scalar_select 0, %s16, %s14
  $region1: #{tpu_custom_call.1} parent=0
    #allocation2 [shape = 'u8[8192]{0}', space=vmem, size = 0x2000, scoped, tag = 'output window, operand 0']
    #allocation3 [shape = 's32[2]{0}', space=sflag, size = 0x8, scoped, tag = 'scoped memory for tpu_custom_call.1']
    %18 = vsyncpa [#allocation3], 0
    %s19 = scalar_lea.sflag [#allocation3], 1
    %20 = vsyncpa %s19, 0
    loop: start=0, step=1, limit=4
    $region2: #{tpu_custom_call.1} parent=1 // loop_pre_header
      _
    $region3: #{tpu_custom_call.1} parent=1 // loop_header
      %s22 = sphi 0, %s26
      %p23 = scmp.ge.s32.totalorder %s22, 4
      %s32 = sphi 0, %s34
      %s35 = sphi 0, %s32
      %s36 = sphi 0, %s35
      %s52 = sphi 0, %s36
      %s56 = sphi 0, %s56
      %s58 = sphi 0, %s56
      %s59 = sphi 0, %s58
      %s73 = sphi 0, %s59
      %s77 = sphi 0, %s77
      %s79 = sphi 0, %s77
      %s80 = sphi 0, %s79
      %s94 = sphi 0, %s80
      %s98 = sphi 0, %s98
      %s100 = sphi 0, %s98
      %s101 = sphi 0, %s100
      %s115 = sphi 0, %s101
      %s119 = sphi 0, %s119
      %s121 = sphi 0, %s119
      %s122 = sphi 0, %s121
      %s136 = sphi 0, %s122
      %s140 = sphi 0, %s140
      %s142 = sphi 0, %s140
      %s143 = sphi 0, %s142
      %s157 = sphi 0, %s143
      %s161 = sphi 0, %s161
      %s163 = sphi 0, %s161
      %s164 = sphi 0, %s163
      %s178 = sphi 0, %s164
      %s182 = sphi 0, %s182
      %s184 = sphi 0, %s182
      %s185 = sphi 0, %s184
      %s199 = sphi 0, %s185
      %s203 = sphi 0, %s203
      %s205 = sphi 0, %s203
      %s206 = sphi 0, %s205
      %s220 = sphi 0, %s206
      %s224 = sphi 0, %s224
      %s226 = sphi 0, %s224
      %s227 = sphi 0, %s226
      %s241 = sphi 0, %s227
      %s245 = sphi 0, %s245
      %s247 = sphi 0, %s245
      %s248 = sphi 0, %s247
      %s262 = sphi 0, %s248
      %s266 = sphi 0, %s266
      %s268 = sphi 0, %s266
      %s269 = sphi 0, %s268
      %s283 = sphi 0, %s269
      %s287 = sphi 0, %s287
      %s289 = sphi 0, %s287
      %s290 = sphi 0, %s289
      %s304 = sphi 0, %s290
      %s310 = sphi 0, %s312
      %s313 = sphi 0, %s310
      %s314 = sphi 0, %s313
      %s330 = sphi 0, %s314
    $region4: #{tpu_custom_call.1} parent=1 // loop_header_branch
      %25 = sbr.rel (%p23) target = $region8
    $region5: #{tpu_custom_call.1} parent=1 // loop_body
      %s27 = ssub.s32 %s22, 1
      %s28 = ssub.s32 %s22, 2
      %s29 = sadd.s32 %s22, 1
      %s30 = ssub.s32 %s22, %s29
      %p31 = scmp.eq.s32.totalorder %s30, 0
      %s33 = sadd.s32 %s32, 1
      %s34 = scalar_select %p31, %s32, %s33
      %p37 = pneg %p31
      %p38 = scmp.eq.s32.totalorder %s22, 1
      %p39 = por %p37, %p38
      %p40 = scmp.ne.s32.totalorder %s32, %s35
      %p41 = scmp.eq.s32.totalorder %s22, 0
      %p42 = por %p40, %p41
      %p43 = scmp.ne.s32.totalorder %s32, %s35
      %p44 = scmp.eq.s32.totalorder %s27, 1
      %p45 = por %p43, %p44
      %p46 = scmp.ne.s32.totalorder %s35, %s36
      %p47 = scmp.eq.s32.totalorder %s27, 0
      %p48 = por %p46, %p47
      %p49 = scmp.ne.s32.totalorder %s35, %s36
      %p50 = scmp.eq.s32.totalorder %s28, 1
      %p51 = por %p49, %p50
      %p53 = scmp.ne.s32.totalorder %s36, %s52
      %p54 = scmp.eq.s32.totalorder %s28, 0
      %p55 = por %p53, %p54
      %s57 = sadd.s32 %s56, 1
      %p60 = scmp.eq.s32.totalorder %s22, 1
      %p61 = scmp.ne.s32.totalorder %s56, %s58
      %p62 = scmp.eq.s32.totalorder %s22, 0
      %p63 = por %p61, %p62
      %p64 = scmp.ne.s32.totalorder %s56, %s58
      %p65 = scmp.eq.s32.totalorder %s27, 1
      %p66 = por %p64, %p65
      %p67 = scmp.ne.s32.totalorder %s58, %s59
      %p68 = scmp.eq.s32.totalorder %s27, 0
      %p69 = por %p67, %p68
      %p70 = scmp.ne.s32.totalorder %s58, %s59
      %p71 = scmp.eq.s32.totalorder %s28, 1
      %p72 = por %p70, %p71
      %p74 = scmp.ne.s32.totalorder %s59, %s73
      %p75 = scmp.eq.s32.totalorder %s28, 0
      %p76 = por %p74, %p75
      %s78 = sadd.s32 %s77, 1
      %p81 = scmp.eq.s32.totalorder %s22, 1
      %p82 = scmp.ne.s32.totalorder %s77, %s79
      %p83 = scmp.eq.s32.totalorder %s22, 0
      %p84 = por %p82, %p83
      %p85 = scmp.ne.s32.totalorder %s77, %s79
      %p86 = scmp.eq.s32.totalorder %s27, 1
      %p87 = por %p85, %p86
      %p88 = scmp.ne.s32.totalorder %s79, %s80
      %p89 = scmp.eq.s32.totalorder %s27, 0
      %p90 = por %p88, %p89
      %p91 = scmp.ne.s32.totalorder %s79, %s80
      %p92 = scmp.eq.s32.totalorder %s28, 1
      %p93 = por %p91, %p92
      %p95 = scmp.ne.s32.totalorder %s80, %s94
      %p96 = scmp.eq.s32.totalorder %s28, 0
      %p97 = por %p95, %p96
      %s99 = sadd.s32 %s98, 1
      %p102 = scmp.eq.s32.totalorder %s22, 1
      %p103 = scmp.ne.s32.totalorder %s98, %s100
      %p104 = scmp.eq.s32.totalorder %s22, 0
      %p105 = por %p103, %p104
      %p106 = scmp.ne.s32.totalorder %s98, %s100
      %p107 = scmp.eq.s32.totalorder %s27, 1
      %p108 = por %p106, %p107
      %p109 = scmp.ne.s32.totalorder %s100, %s101
      %p110 = scmp.eq.s32.totalorder %s27, 0
      %p111 = por %p109, %p110
      %p112 = scmp.ne.s32.totalorder %s100, %s101
      %p113 = scmp.eq.s32.totalorder %s28, 1
      %p114 = por %p112, %p113
      %p116 = scmp.ne.s32.totalorder %s101, %s115
      %p117 = scmp.eq.s32.totalorder %s28, 0
      %p118 = por %p116, %p117
      %s120 = sadd.s32 %s119, 1
      %p123 = scmp.eq.s32.totalorder %s22, 1
      %p124 = scmp.ne.s32.totalorder %s119, %s121
      %p125 = scmp.eq.s32.totalorder %s22, 0
      %p126 = por %p124, %p125
      %p127 = scmp.ne.s32.totalorder %s119, %s121
      %p128 = scmp.eq.s32.totalorder %s27, 1
      %p129 = por %p127, %p128
      %p130 = scmp.ne.s32.totalorder %s121, %s122
      %p131 = scmp.eq.s32.totalorder %s27, 0
      %p132 = por %p130, %p131
      %p133 = scmp.ne.s32.totalorder %s121, %s122
      %p134 = scmp.eq.s32.totalorder %s28, 1
      %p135 = por %p133, %p134
      %p137 = scmp.ne.s32.totalorder %s122, %s136
      %p138 = scmp.eq.s32.totalorder %s28, 0
      %p139 = por %p137, %p138
      %s141 = sadd.s32 %s140, 1
      %p144 = scmp.eq.s32.totalorder %s22, 1
      %p145 = scmp.ne.s32.totalorder %s140, %s142
      %p146 = scmp.eq.s32.totalorder %s22, 0
      %p147 = por %p145, %p146
      %p148 = scmp.ne.s32.totalorder %s140, %s142
      %p149 = scmp.eq.s32.totalorder %s27, 1
      %p150 = por %p148, %p149
      %p151 = scmp.ne.s32.totalorder %s142, %s143
      %p152 = scmp.eq.s32.totalorder %s27, 0
      %p153 = por %p151, %p152
      %p154 = scmp.ne.s32.totalorder %s142, %s143
      %p155 = scmp.eq.s32.totalorder %s28, 1
      %p156 = por %p154, %p155
      %p158 = scmp.ne.s32.totalorder %s143, %s157
      %p159 = scmp.eq.s32.totalorder %s28, 0
      %p160 = por %p158, %p159
      %s162 = sadd.s32 %s161, 1
      %p165 = scmp.eq.s32.totalorder %s22, 1
      %p166 = scmp.ne.s32.totalorder %s161, %s163
      %p167 = scmp.eq.s32.totalorder %s22, 0
      %p168 = por %p166, %p167
      %p169 = scmp.ne.s32.totalorder %s161, %s163
      %p170 = scmp.eq.s32.totalorder %s27, 1
      %p171 = por %p169, %p170
      %p172 = scmp.ne.s32.totalorder %s163, %s164
      %p173 = scmp.eq.s32.totalorder %s27, 0
      %p174 = por %p172, %p173
      %p175 = scmp.ne.s32.totalorder %s163, %s164
      %p176 = scmp.eq.s32.totalorder %s28, 1
      %p177 = por %p175, %p176
      %p179 = scmp.ne.s32.totalorder %s164, %s178
      %p180 = scmp.eq.s32.totalorder %s28, 0
      %p181 = por %p179, %p180
      %s183 = sadd.s32 %s182, 1
      %p186 = scmp.eq.s32.totalorder %s22, 1
      %p187 = scmp.ne.s32.totalorder %s182, %s184
      %p188 = scmp.eq.s32.totalorder %s22, 0
      %p189 = por %p187, %p188
      %p190 = scmp.ne.s32.totalorder %s182, %s184
      %p191 = scmp.eq.s32.totalorder %s27, 1
      %p192 = por %p190, %p191
      %p193 = scmp.ne.s32.totalorder %s184, %s185
      %p194 = scmp.eq.s32.totalorder %s27, 0
      %p195 = por %p193, %p194
      %p196 = scmp.ne.s32.totalorder %s184, %s185
      %p197 = scmp.eq.s32.totalorder %s28, 1
      %p198 = por %p196, %p197
      %p200 = scmp.ne.s32.totalorder %s185, %s199
      %p201 = scmp.eq.s32.totalorder %s28, 0
      %p202 = por %p200, %p201
      %s204 = sadd.s32 %s203, 1
      %p207 = scmp.eq.s32.totalorder %s22, 1
      %p208 = scmp.ne.s32.totalorder %s203, %s205
      %p209 = scmp.eq.s32.totalorder %s22, 0
      %p210 = por %p208, %p209
      %p211 = scmp.ne.s32.totalorder %s203, %s205
      %p212 = scmp.eq.s32.totalorder %s27, 1
      %p213 = por %p211, %p212
      %p214 = scmp.ne.s32.totalorder %s205, %s206
      %p215 = scmp.eq.s32.totalorder %s27, 0
      %p216 = por %p214, %p215
      %p217 = scmp.ne.s32.totalorder %s205, %s206
      %p218 = scmp.eq.s32.totalorder %s28, 1
      %p219 = por %p217, %p218
      %p221 = scmp.ne.s32.totalorder %s206, %s220
      %p222 = scmp.eq.s32.totalorder %s28, 0
      %p223 = por %p221, %p222
      %s225 = sadd.s32 %s224, 1
      %p228 = scmp.eq.s32.totalorder %s22, 1
      %p229 = scmp.ne.s32.totalorder %s224, %s226
      %p230 = scmp.eq.s32.totalorder %s22, 0
      %p231 = por %p229, %p230
      %p232 = scmp.ne.s32.totalorder %s224, %s226
      %p233 = scmp.eq.s32.totalorder %s27, 1
      %p234 = por %p232, %p233
      %p235 = scmp.ne.s32.totalorder %s226, %s227
      %p236 = scmp.eq.s32.totalorder %s27, 0
      %p237 = por %p235, %p236
      %p238 = scmp.ne.s32.totalorder %s226, %s227
      %p239 = scmp.eq.s32.totalorder %s28, 1
      %p240 = por %p238, %p239
      %p242 = scmp.ne.s32.totalorder %s227, %s241
      %p243 = scmp.eq.s32.totalorder %s28, 0
      %p244 = por %p242, %p243
      %s246 = sadd.s32 %s245, 1
      %p249 = scmp.eq.s32.totalorder %s22, 1
      %p250 = scmp.ne.s32.totalorder %s245, %s247
      %p251 = scmp.eq.s32.totalorder %s22, 0
      %p252 = por %p250, %p251
      %p253 = scmp.ne.s32.totalorder %s245, %s247
      %p254 = scmp.eq.s32.totalorder %s27, 1
      %p255 = por %p253, %p254
      %p256 = scmp.ne.s32.totalorder %s247, %s248
      %p257 = scmp.eq.s32.totalorder %s27, 0
      %p258 = por %p256, %p257
      %p259 = scmp.ne.s32.totalorder %s247, %s248
      %p260 = scmp.eq.s32.totalorder %s28, 1
      %p261 = por %p259, %p260
      %p263 = scmp.ne.s32.totalorder %s248, %s262
      %p264 = scmp.eq.s32.totalorder %s28, 0
      %p265 = por %p263, %p264
      %s267 = sadd.s32 %s266, 1
      %p270 = scmp.eq.s32.totalorder %s22, 1
      %p271 = scmp.ne.s32.totalorder %s266, %s268
      %p272 = scmp.eq.s32.totalorder %s22, 0
      %p273 = por %p271, %p272
      %p274 = scmp.ne.s32.totalorder %s266, %s268
      %p275 = scmp.eq.s32.totalorder %s27, 1
      %p276 = por %p274, %p275
      %p277 = scmp.ne.s32.totalorder %s268, %s269
      %p278 = scmp.eq.s32.totalorder %s27, 0
      %p279 = por %p277, %p278
      %p280 = scmp.ne.s32.totalorder %s268, %s269
      %p281 = scmp.eq.s32.totalorder %s28, 1
      %p282 = por %p280, %p281
      %p284 = scmp.ne.s32.totalorder %s269, %s283
      %p285 = scmp.eq.s32.totalorder %s28, 0
      %p286 = por %p284, %p285
      %s288 = sadd.s32 %s287, 1
      %p291 = scmp.eq.s32.totalorder %s22, 1
      %p292 = scmp.ne.s32.totalorder %s287, %s289
      %p293 = scmp.eq.s32.totalorder %s22, 0
      %p294 = por %p292, %p293
      %p295 = scmp.ne.s32.totalorder %s287, %s289
      %p296 = scmp.eq.s32.totalorder %s27, 1
      %p297 = por %p295, %p296
      %p298 = scmp.ne.s32.totalorder %s289, %s290
      %p299 = scmp.eq.s32.totalorder %s27, 0
      %p300 = por %p298, %p299
      %p301 = scmp.ne.s32.totalorder %s289, %s290
      %p302 = scmp.eq.s32.totalorder %s28, 1
      %p303 = por %p301, %p302
      %p305 = scmp.ne.s32.totalorder %s290, %s304
      %p306 = scmp.eq.s32.totalorder %s28, 0
      %p307 = por %p305, %p306
      %s308 = ssub.s32 %s22, %s29
      %p309 = scmp.eq.s32.totalorder %s308, 0
      %s311 = sadd.s32 %s310, 1
      %s312 = scalar_select %p309, %s310, %s311
      %p315 = pneg %p309
      %p316 = scmp.eq.s32.totalorder %s22, 1
      %p317 = por %p315, %p316
      %p318 = scmp.ne.s32.totalorder %s310, %s313
      %p319 = scmp.eq.s32.totalorder %s22, 0
      %p320 = por %p318, %p319
      %p321 = scmp.ne.s32.totalorder %s310, %s313
      %p322 = scmp.eq.s32.totalorder %s27, 1
      %p323 = por %p321, %p322
      %p324 = scmp.ne.s32.totalorder %s313, %s314
      %p325 = scmp.eq.s32.totalorder %s27, 0
      %p326 = por %p324, %p325
      %p327 = scmp.ne.s32.totalorder %s313, %s314
      %p328 = scmp.eq.s32.totalorder %s28, 1
      %p329 = por %p327, %p328
      %p331 = scmp.ne.s32.totalorder %s314, %s330
      %p332 = scmp.eq.s32.totalorder %s28, 0
      %p333 = por %p331, %p332
      %p334 = scmp.le.s32.totalorder 1, %s22
      %p335 = scmp.lt.s32.totalorder %s22, 3
      %p336 = pnand %p334, %p335
      %p337 = pneg %p336
      // Predicated region
      $region9: #{tpu_custom_call.1} parent=5 // pred_check
        _
      $region10: #{tpu_custom_call.1} parent=5 // pred_check_branch
        %339 = sbr.rel (%p336) target = $region12
      $region11: #{tpu_custom_call.1} parent=5 // pred_region
        %s340 = ssub.s32 %s22, 1
        // Predicated region
        $region13: #{tpu_custom_call.1} parent=11 // pred_check
          %p341 = pneg %p69
        $region14: #{tpu_custom_call.1} parent=11 // pred_check_branch
          %343 = sbr.rel (%p341) target = $region16
        $region15: #{tpu_custom_call.1} parent=11 // pred_region
          _
        $region16: #{tpu_custom_call.1} parent=11 // pred_fallthru
          _
        // Predicated region
        $region17: #{tpu_custom_call.1} parent=11 // pred_check
          %p344 = pneg %p90
        $region18: #{tpu_custom_call.1} parent=11 // pred_check_branch
          %346 = sbr.rel (%p344) target = $region20
        $region19: #{tpu_custom_call.1} parent=11 // pred_region
          _
        $region20: #{tpu_custom_call.1} parent=11 // pred_fallthru
          _
        // Predicated region
        $region21: #{tpu_custom_call.1} parent=11 // pred_check
          %p347 = pneg %p111
        $region22: #{tpu_custom_call.1} parent=11 // pred_check_branch
          %349 = sbr.rel (%p347) target = $region24
        $region23: #{tpu_custom_call.1} parent=11 // pred_region
          _
        $region24: #{tpu_custom_call.1} parent=11 // pred_fallthru
          _
        // Predicated region
        $region25: #{tpu_custom_call.1} parent=11 // pred_check
          %p350 = pneg %p132
        $region26: #{tpu_custom_call.1} parent=11 // pred_check_branch
          %352 = sbr.rel (%p350) target = $region28
        $region27: #{tpu_custom_call.1} parent=11 // pred_region
          _
        $region28: #{tpu_custom_call.1} parent=11 // pred_fallthru
          _
        // Predicated region
        $region29: #{tpu_custom_call.1} parent=11 // pred_check
          %p353 = pneg %p153
        $region30: #{tpu_custom_call.1} parent=11 // pred_check_branch
          %355 = sbr.rel (%p353) target = $region32
        $region31: #{tpu_custom_call.1} parent=11 // pred_region
          _
        $region32: #{tpu_custom_call.1} parent=11 // pred_fallthru
          _
        // Predicated region
        $region33: #{tpu_custom_call.1} parent=11 // pred_check
          %p356 = pneg %p174
        $region34: #{tpu_custom_call.1} parent=11 // pred_check_branch
          %358 = sbr.rel (%p356) target = $region36
        $region35: #{tpu_custom_call.1} parent=11 // pred_region
          _
        $region36: #{tpu_custom_call.1} parent=11 // pred_fallthru
          _
        // Predicated region
        $region37: #{tpu_custom_call.1} parent=11 // pred_check
          %p359 = pneg %p195
        $region38: #{tpu_custom_call.1} parent=11 // pred_check_branch
          %361 = sbr.rel (%p359) target = $region40
        $region39: #{tpu_custom_call.1} parent=11 // pred_region
          _
        $region40: #{tpu_custom_call.1} parent=11 // pred_fallthru
          _
        // Predicated region
        $region41: #{tpu_custom_call.1} parent=11 // pred_check
          %p362 = pneg %p216
        $region42: #{tpu_custom_call.1} parent=11 // pred_check_branch
          %364 = sbr.rel (%p362) target = $region44
        $region43: #{tpu_custom_call.1} parent=11 // pred_region
          _
        $region44: #{tpu_custom_call.1} parent=11 // pred_fallthru
          _
        // Predicated region
        $region45: #{tpu_custom_call.1} parent=11 // pred_check
          %p365 = pneg %p237
        $region46: #{tpu_custom_call.1} parent=11 // pred_check_branch
          %367 = sbr.rel (%p365) target = $region48
        $region47: #{tpu_custom_call.1} parent=11 // pred_region
          _
        $region48: #{tpu_custom_call.1} parent=11 // pred_fallthru
          _
        // Predicated region
        $region49: #{tpu_custom_call.1} parent=11 // pred_check
          %p368 = pneg %p258
        $region50: #{tpu_custom_call.1} parent=11 // pred_check_branch
          %370 = sbr.rel (%p368) target = $region52
        $region51: #{tpu_custom_call.1} parent=11 // pred_region
          _
        $region52: #{tpu_custom_call.1} parent=11 // pred_fallthru
          _
        // Predicated region
        $region53: #{tpu_custom_call.1} parent=11 // pred_check
          %p371 = pneg %p279
        $region54: #{tpu_custom_call.1} parent=11 // pred_check_branch
          %373 = sbr.rel (%p371) target = $region56
        $region55: #{tpu_custom_call.1} parent=11 // pred_region
          _
        $region56: #{tpu_custom_call.1} parent=11 // pred_fallthru
          _
        // Predicated region
        $region57: #{tpu_custom_call.1} parent=11 // pred_check
          %p374 = pneg %p300
        $region58: #{tpu_custom_call.1} parent=11 // pred_check_branch
          %376 = sbr.rel (%p374) target = $region60
        $region59: #{tpu_custom_call.1} parent=11 // pred_region
          _
        $region60: #{tpu_custom_call.1} parent=11 // pred_fallthru
          _
      $region12: #{tpu_custom_call.1} parent=5 // pred_fallthru
        _
      %p377 = scmp.lt.s32.totalorder %s22, 2
      // Predicated region
      $region61: #{tpu_custom_call.1} parent=5 // pred_check
        %p378 = pneg %p377
      $region62: #{tpu_custom_call.1} parent=5 // pred_check_branch
        %380 = sbr.rel (%p378) target = $region64
      $region63: #{tpu_custom_call.1} parent=5 // pred_region
        // Predicated region
        $region65: #{tpu_custom_call.1} parent=63 // pred_check
          %p381 = pneg %p42
        $region66: #{tpu_custom_call.1} parent=63 // pred_check_branch
          %383 = sbr.rel (%p381) target = $region68
        $region67: #{tpu_custom_call.1} parent=63 // pred_region
          %p384 = scmp.lt.s32.totalorder %s22, 1
          %s385 = scalar_select %p384, %s22, 1
          %s386 = smul.addr %s385, 8
          %s387 = scalar_lea.vmem %s0, %s386
        $region68: #{tpu_custom_call.1} parent=63 // pred_fallthru
          _
      $region64: #{tpu_custom_call.1} parent=5 // pred_fallthru
        _
      %p388 = scmp.le.s32.totalorder 1, %s22
      %p389 = scmp.lt.s32.totalorder %s22, 3
      %p390 = pnand %p388, %p389
      %p391 = pneg %p390
      // Predicated region
      $region69: #{tpu_custom_call.1} parent=5 // pred_check
        _
      $region70: #{tpu_custom_call.1} parent=5 // pred_check_branch
        %393 = sbr.rel (%p390) target = $region72
      $region71: #{tpu_custom_call.1} parent=5 // pred_region
        %s394 = ssub.s32 %s22, 1
        %p395 = scmp.lt.s32.totalorder %s27, 1
        %s396 = scalar_select %p395, %s27, 1
        %s397 = smul.addr %s396, 8
        %s398 = scalar_lea.vmem %s0, %s397
        %p399 = pneg %p48
        %p400 = pneg %p45
        %p401 = pneg %p69
        %p402 = pneg %p66
        %p403 = pneg %p90
        %p404 = pneg %p87
        %p405 = pneg %p111
        %p406 = pneg %p108
        %p407 = pneg %p132
        %p408 = pneg %p129
        %p409 = pneg %p153
        %p410 = pneg %p150
        %p411 = pneg %p174
        %p412 = pneg %p171
        %p413 = pneg %p195
        %p414 = pneg %p192
        %p415 = pneg %p216
        %p416 = pneg %p213
        %p417 = pneg %p237
        %p418 = pneg %p234
        %p419 = pneg %p258
        %p420 = pneg %p255
        %p421 = pneg %p279
        %p422 = pneg %p276
        %p423 = pneg %p300
        %p424 = pneg %p297
        %p425 = pneg %p326
        %p426 = pneg %p323
        %s427 = sand.u32 %s313, 1
        %s428 = scalar_lea.sflag [#allocation3], %s427
        %s429 = sand.u32 %s313, 1
        %s430 = smul.addr %s429, 8
        %s431 = scalar_lea.vmem [#allocation2], %s430
        %p432 = scmp.lt.s32.totalorder %s27, 1
        %s433 = scalar_select %p432, %s27, 1
        %s434 = smul.addr %s433, 8
        %s435 = scalar_lea.vmem %s0, %s434
        %v437 = vld [vmem:[%s435] sm:$0xff]
        %v438 = vld [vmem:[%s1] sm:$0x1]
        %v439 = vld [vmem:[%s2] sm:$0x1]
        %vm440 = vcmask 261120
        %v441 = vsel %vm440, %v437, 0.0
        %442 = vadd.xlane.f32.xlu0 %v441
        %v443 = vpop.xlane.xlu0 %442
        %v444 = vrcp.pop 32.0
        %v445 = vmul.f32 32.0, %v444
        %v446 = vsub.f32 1.0, %v445
        %v447 = vmul.f32 %v444, %v446
        %v448 = vadd.f32 %v444, %v447
        %vm449 = vweird.f32 %v444
        %v450 = vsel %vm449, %v444, %v448
        %v451 = vmul.f32 %v443, %v450
        %v452 = vsub.f32 %v437, %v451
        %v453 = vmul.f32 %v452, %v452
        %v454 = vsel %vm440, %v453, 0.0
        %455 = vadd.xlane.f32.xlu0 %v454
        %v456 = vpop.xlane.xlu0 %455
        %v457 = vmul.f32 %v456, %v450
        %v458 = vadd.f32 %v457, 1e-05
        %v459 = vrsqrt.pop %v458
        %v460 = vmul.f32 %v459, %v458
        %v461 = vmul.f32 %v460, %v459
        %v462 = vmul.f32 0.5, %v461
        %v463 = vsub.f32 1.5, %v462
        %v464 = vmul.f32 %v459, %v463
        %vm465 = vweird.f32 %v458
        %vm466 = vweird.f32 %v459
        %vm467 = vmor %vm465, %vm466
        %v468 = vsel %vm467, %v459, %v464
        %v469 = vmul.f32 %v452, %v468
        %v471 = vperm.slane %v438, 0
        %v473 = vmul.f32 %v469, %v471
        %v475 = vperm.slane %v439, 0
        %v477 = vadd.f32 %v473, %v475
        %v478 = vpack.c.bf16 %v477, %v477
        %v479 = vld [vmem:[%s3] sm:$0xf]
        %v480 = vld [vmem:[%s3 + $0x4] sm:$0xf]
        %v481 = vld [vmem:[%s3 + $0x8] sm:$0xf]
        %v482 = vld [vmem:[%s3 + $0xc] sm:$0xf]
        %v483 = vld [vmem:[%s4] sm:$0x1]
        %v485 = vperm.slane %v483, 0
        %v491 = vunpack.c.l.b16 %v479
        %v492 = vunpack.c.l.b16 %v480
        %v493 = vunpack.c.l.b16 %v481
        %v494 = vunpack.c.l.b16 %v482
        %v495 = vpack.c.b16 %v492, %v491
        %v496 = vpack.c.b16 %v494, %v493
        %v500 = vsel %vm440, %v478, 0
        %502 = vmatpush.bf16.msra.mxu0 0
        %503 = vmatpush.bf16.msra.mxu0 0
        %504 = vmatpush.bf16.msra.mxu0 0
        %505 = vmatpush.bf16.msra.mxu0 0
        %506 = vmatpush.bf16.msra.mxu0 0
        %507 = vmatpush.bf16.msra.mxu0 0
        %508 = vmatpush.bf16.msra.mxu0 %v496
        %509 = vmatpush.bf16.msra.mxu0 %v495
        %510 = vmatmul.bf16.gmra.mxu0 %v500
        %v511 = vpop.f32.mrf.mxu0
        %v512 = vadd.f32 %v485, %v511
        %v513 = vpop.f32.mrf.mxu0
        %514 = vdwg.mxu0
        %v515 = vmul.f32 %v512, 0.35355338
        %v516 = vpack.c.bf16 %v515, %v515
        %518 = vrot.lane.b32.xlu0 %v516, 120
        %v519 = vpop.permute.xlu0 %518
        %520 = vrot.lane.b32.xlu0 %v516, 112
        %v521 = vpop.permute.xlu0 %520
        %522 = vrot.lane.b32.xlu0 %v516, 104
        %v523 = vpop.permute.xlu0 %522
        %v526 = vpack.i.b16 %v519, %v516
        %v527 = vshrl.u32 %v516, 16
        %v528 = vshrl.u32 %v519, 16
        %v529 = vpack.i.b16 %v528, %v527
        %v532 = vpack.i.b16 %v523, %v521
        %v533 = vshrl.u32 %v521, 16
        %v534 = vshrl.u32 %v523, 16
        %v535 = vpack.i.b16 %v534, %v533
        %v538 = vunpack.c.l.s4 1983009808
        %v539 = vunpack.c.0.s8 %v538
        %v540 = vperm.slane %v526, %v539
        %v543 = vunpack.c.l.s4 1983009808
        %v544 = vunpack.c.0.s8 %v543
        %v545 = vperm.slane %v532, %v544
        %v546 = vrot.slane %v545, 4
        %vm547 = vcmask 1047556
        %v548 = vsel %vm547, %v546, %v540
        %v549 = vrot.slane %v540, 4
        %v550 = vsel %vm547, %v545, %v549
        %v552 = vunpack.c.l.s4 1934713408
        %v553 = vunpack.c.0.s8 %v552
        %v554 = vperm.slane %v548, %v553
        %v556 = vunpack.c.l.s4 1934713408
        %v557 = vunpack.c.0.s8 %v556
        %v558 = vperm.slane %v550, %v557
        %v559 = vrot.slane %v554, 4
        %v560 = vsel %vm547, 0, %v559
        %v561 = vrot.slane %v558, 4
        %v562 = vsel %vm547, 0, %v561
        %v565 = vunpack.c.l.s4 1983009808
        %v566 = vunpack.c.0.s8 %v565
        %v567 = vperm.slane %v529, %v566
        %v570 = vunpack.c.l.s4 1983009808
        %v571 = vunpack.c.0.s8 %v570
        %v572 = vperm.slane %v535, %v571
        %v573 = vrot.slane %v572, 4
        %v574 = vsel %vm547, %v573, %v567
        %v575 = vrot.slane %v567, 4
        %v576 = vsel %vm547, %v572, %v575
        %v578 = vunpack.c.l.s4 1934713408
        %v579 = vunpack.c.0.s8 %v578
        %v580 = vperm.slane %v574, %v579
        %v582 = vunpack.c.l.s4 1934713408
        %v583 = vunpack.c.0.s8 %v582
        %v584 = vperm.slane %v576, %v583
        %v585 = vrot.slane %v580, 4
        %v586 = vsel %vm547, 0, %v585
        %v587 = vrot.slane %v584, 4
        %v588 = vsel %vm547, 0, %v587
        %v589 = vsel %vm547, %v561, %v554
        %v591 = vunpack.c.l.s4 1983009808
        %v592 = vunpack.c.0.s8 %v591
        %v593 = vperm.slane %v589, %v592
        %v594 = vrot.slane %v562, 4
        %v595 = vsel %vm547, %v594, %v560
        %v597 = vunpack.c.l.s4 1983009808
        %v598 = vunpack.c.0.s8 %v597
        %v599 = vperm.slane %v595, %v598
        %v600 = vrot.slane %v599, 4
        %v601 = vsel %vm547, %v600, %v593
        %v603 = vunpack.c.l.s4 1934713408
        %v604 = vunpack.c.0.s8 %v603
        %v605 = vperm.slane %v601, %v604
        %v606 = vrot.slane %v605, 4
        %v607 = vsel %vm547, 0, %v606
        %v608 = vsel %vm547, %v587, %v580
        %v610 = vunpack.c.l.s4 1983009808
        %v611 = vunpack.c.0.s8 %v610
        %v612 = vperm.slane %v608, %v611
        %v613 = vrot.slane %v588, 4
        %v614 = vsel %vm547, %v613, %v586
        %v616 = vunpack.c.l.s4 1983009808
        %v617 = vunpack.c.0.s8 %v616
        %v618 = vperm.slane %v614, %v617
        %v619 = vrot.slane %v618, 4
        %v620 = vsel %vm547, %v619, %v612
        %v622 = vunpack.c.l.s4 1934713408
        %v623 = vunpack.c.0.s8 %v622
        %v624 = vperm.slane %v620, %v623
        %v625 = vrot.slane %v624, 4
        %v626 = vsel %vm547, 0, %v625
        %v629 = vpack.i.b16 %v624, %v605
        %v630 = vshrl.u32 %v605, 16
        %v631 = vshrl.u32 %v624, 16
        %v632 = vpack.i.b16 %v631, %v630
        %v635 = vpack.i.b16 %v626, %v607
        %v636 = vshrl.u32 %v607, 16
        %v637 = vshrl.u32 %v626, 16
        %v638 = vpack.i.b16 %v637, %v636
        %v639 = vpack.c.bf16 %v512, %v512
        %641 = vrot.lane.b32.xlu0 %v639, 120
        %v642 = vpop.permute.xlu0 %641
        %643 = vrot.lane.b32.xlu0 %v639, 112
        %v644 = vpop.permute.xlu0 %643
        %645 = vrot.lane.b32.xlu0 %v639, 104
        %v646 = vpop.permute.xlu0 %645
        %647 = vrot.lane.b32.xlu0 %v639, 96
        %v648 = vpop.permute.xlu0 %647
        %649 = vrot.lane.b32.xlu0 %v642, 96
        %v650 = vpop.permute.xlu0 %649
        %651 = vrot.lane.b32.xlu0 %v644, 96
        %v652 = vpop.permute.xlu0 %651
        %653 = vrot.lane.b32.xlu0 %v646, 96
        %v654 = vpop.permute.xlu0 %653
        %v657 = vpack.i.b16 %v650, %v648
        %v658 = vshrl.u32 %v648, 16
        %v659 = vshrl.u32 %v650, 16
        %v660 = vpack.i.b16 %v659, %v658
        %v663 = vpack.i.b16 %v654, %v652
        %v664 = vshrl.u32 %v652, 16
        %v665 = vshrl.u32 %v654, 16
        %v666 = vpack.i.b16 %v665, %v664
        %v669 = vunpack.c.l.s4 1983009808
        %v670 = vunpack.c.0.s8 %v669
        %v671 = vperm.slane %v657, %v670
        %v674 = vunpack.c.l.s4 1983009808
        %v675 = vunpack.c.0.s8 %v674
        %v676 = vperm.slane %v663, %v675
        %v677 = vrot.slane %v676, 4
        %v678 = vsel %vm547, %v677, %v671
        %v679 = vrot.slane %v671, 4
        %v680 = vsel %vm547, %v676, %v679
        %v682 = vunpack.c.l.s4 1934713408
        %v683 = vunpack.c.0.s8 %v682
        %v684 = vperm.slane %v678, %v683
        %v686 = vunpack.c.l.s4 1934713408
        %v687 = vunpack.c.0.s8 %v686
        %v688 = vperm.slane %v680, %v687
        %v689 = vrot.slane %v684, 4
        %v690 = vsel %vm547, 0, %v689
        %v691 = vrot.slane %v688, 4
        %v692 = vsel %vm547, 0, %v691
        %v695 = vunpack.c.l.s4 1983009808
        %v696 = vunpack.c.0.s8 %v695
        %v697 = vperm.slane %v660, %v696
        %v700 = vunpack.c.l.s4 1983009808
        %v701 = vunpack.c.0.s8 %v700
        %v702 = vperm.slane %v666, %v701
        %v703 = vrot.slane %v702, 4
        %v704 = vsel %vm547, %v703, %v697
        %v705 = vrot.slane %v697, 4
        %v706 = vsel %vm547, %v702, %v705
        %v708 = vunpack.c.l.s4 1934713408
        %v709 = vunpack.c.0.s8 %v708
        %v710 = vperm.slane %v704, %v709
        %v712 = vunpack.c.l.s4 1934713408
        %v713 = vunpack.c.0.s8 %v712
        %v714 = vperm.slane %v706, %v713
        %v715 = vrot.slane %v710, 4
        %v716 = vsel %vm547, 0, %v715
        %v717 = vrot.slane %v714, 4
        %v718 = vsel %vm547, 0, %v717
        %v719 = vsel %vm547, %v691, %v684
        %v721 = vunpack.c.l.s4 1983009808
        %v722 = vunpack.c.0.s8 %v721
        %v723 = vperm.slane %v719, %v722
        %v724 = vrot.slane %v692, 4
        %v725 = vsel %vm547, %v724, %v690
        %v727 = vunpack.c.l.s4 1983009808
        %v728 = vunpack.c.0.s8 %v727
        %v729 = vperm.slane %v725, %v728
        %v730 = vrot.slane %v729, 4
        %v731 = vsel %vm547, %v730, %v723
        %v733 = vunpack.c.l.s4 1934713408
        %v734 = vunpack.c.0.s8 %v733
        %v735 = vperm.slane %v731, %v734
        %v736 = vrot.slane %v735, 4
        %v737 = vsel %vm547, 0, %v736
        %v738 = vsel %vm547, %v717, %v710
        %v740 = vunpack.c.l.s4 1983009808
        %v741 = vunpack.c.0.s8 %v740
        %v742 = vperm.slane %v738, %v741
        %v743 = vrot.slane %v718, 4
        %v744 = vsel %vm547, %v743, %v716
        %v746 = vunpack.c.l.s4 1983009808
        %v747 = vunpack.c.0.s8 %v746
        %v748 = vperm.slane %v744, %v747
        %v749 = vrot.slane %v748, 4
        %v750 = vsel %vm547, %v749, %v742
        %v752 = vunpack.c.l.s4 1934713408
        %v753 = vunpack.c.0.s8 %v752
        %v754 = vperm.slane %v750, %v753
        %v755 = vrot.slane %v754, 4
        %v756 = vsel %vm547, 0, %v755
        %v759 = vpack.i.b16 %v754, %v735
        %v760 = vshrl.u32 %v735, 16
        %v761 = vshrl.u32 %v754, 16
        %v762 = vpack.i.b16 %v761, %v760
        %v765 = vpack.i.b16 %v756, %v737
        %v766 = vshrl.u32 %v737, 16
        %v767 = vshrl.u32 %v756, 16
        %v768 = vpack.i.b16 %v767, %v766
        %769 = vrot.lane.b32.xlu0 %v639, 64
        %v770 = vpop.permute.xlu0 %769
        %771 = vrot.lane.b32.xlu0 %v642, 64
        %v772 = vpop.permute.xlu0 %771
        %773 = vrot.lane.b32.xlu0 %v644, 64
        %v774 = vpop.permute.xlu0 %773
        %775 = vrot.lane.b32.xlu0 %v646, 64
        %v776 = vpop.permute.xlu0 %775
        %v779 = vpack.i.b16 %v772, %v770
        %v780 = vshrl.u32 %v770, 16
        %v781 = vshrl.u32 %v772, 16
        %v782 = vpack.i.b16 %v781, %v780
        %v785 = vpack.i.b16 %v776, %v774
        %v786 = vshrl.u32 %v774, 16
        %v787 = vshrl.u32 %v776, 16
        %v788 = vpack.i.b16 %v787, %v786
        %v791 = vunpack.c.l.s4 1983009808
        %v792 = vunpack.c.0.s8 %v791
        %v793 = vperm.slane %v779, %v792
        %v796 = vunpack.c.l.s4 1983009808
        %v797 = vunpack.c.0.s8 %v796
        %v798 = vperm.slane %v785, %v797
        %v799 = vrot.slane %v798, 4
        %v800 = vsel %vm547, %v799, %v793
        %v801 = vrot.slane %v793, 4
        %v802 = vsel %vm547, %v798, %v801
        %v804 = vunpack.c.l.s4 1934713408
        %v805 = vunpack.c.0.s8 %v804
        %v806 = vperm.slane %v800, %v805
        %v808 = vunpack.c.l.s4 1934713408
        %v809 = vunpack.c.0.s8 %v808
        %v810 = vperm.slane %v802, %v809
        %v811 = vrot.slane %v806, 4
        %v812 = vsel %vm547, 0, %v811
        %v813 = vrot.slane %v810, 4
        %v814 = vsel %vm547, 0, %v813
        %v817 = vunpack.c.l.s4 1983009808
        %v818 = vunpack.c.0.s8 %v817
        %v819 = vperm.slane %v782, %v818
        %v822 = vunpack.c.l.s4 1983009808
        %v823 = vunpack.c.0.s8 %v822
        %v824 = vperm.slane %v788, %v823
        %v825 = vrot.slane %v824, 4
        %v826 = vsel %vm547, %v825, %v819
        %v827 = vrot.slane %v819, 4
        %v828 = vsel %vm547, %v824, %v827
        %v830 = vunpack.c.l.s4 1934713408
        %v831 = vunpack.c.0.s8 %v830
        %v832 = vperm.slane %v826, %v831
        %v834 = vunpack.c.l.s4 1934713408
        %v835 = vunpack.c.0.s8 %v834
        %v836 = vperm.slane %v828, %v835
        %v837 = vrot.slane %v832, 4
        %v838 = vsel %vm547, 0, %v837
        %v839 = vrot.slane %v836, 4
        %v840 = vsel %vm547, 0, %v839
        %v841 = vsel %vm547, %v813, %v806
        %v843 = vunpack.c.l.s4 1983009808
        %v844 = vunpack.c.0.s8 %v843
        %v845 = vperm.slane %v841, %v844
        %v846 = vrot.slane %v814, 4
        %v847 = vsel %vm547, %v846, %v812
        %v849 = vunpack.c.l.s4 1983009808
        %v850 = vunpack.c.0.s8 %v849
        %v851 = vperm.slane %v847, %v850
        %v852 = vrot.slane %v851, 4
        %v853 = vsel %vm547, %v852, %v845
        %v855 = vunpack.c.l.s4 1934713408
        %v856 = vunpack.c.0.s8 %v855
        %v857 = vperm.slane %v853, %v856
        %v858 = vrot.slane %v857, 4
        %v859 = vsel %vm547, 0, %v858
        %v860 = vsel %vm547, %v839, %v832
        %v862 = vunpack.c.l.s4 1983009808
        %v863 = vunpack.c.0.s8 %v862
        %v864 = vperm.slane %v860, %v863
        %v865 = vrot.slane %v840, 4
        %v866 = vsel %vm547, %v865, %v838
        %v868 = vunpack.c.l.s4 1983009808
        %v869 = vunpack.c.0.s8 %v868
        %v870 = vperm.slane %v866, %v869
        %v871 = vrot.slane %v870, 4
        %v872 = vsel %vm547, %v871, %v864
        %v874 = vunpack.c.l.s4 1934713408
        %v875 = vunpack.c.0.s8 %v874
        %v876 = vperm.slane %v872, %v875
        %v877 = vrot.slane %v876, 4
        %v878 = vsel %vm547, 0, %v877
        %v881 = vpack.i.b16 %v876, %v857
        %v882 = vshrl.u32 %v857, 16
        %v883 = vshrl.u32 %v876, 16
        %v884 = vpack.i.b16 %v883, %v882
        %v887 = vpack.i.b16 %v878, %v859
        %v888 = vshrl.u32 %v859, 16
        %v889 = vshrl.u32 %v878, 16
        %v890 = vpack.i.b16 %v889, %v888
        %vm891 = vcmask 64512
        %v893 = vsel %vm891, %v629, 0
        %v896 = vsel %vm891, %v759, 0
        %898 = vmatpush.bf16.xpose.msra.mxu0 0
        %899 = vmatpush.bf16.xpose.msra.mxu0 0
        %900 = vmatpush.bf16.xpose.msra.mxu0 0
        %901 = vmatpush.bf16.xpose.msra.mxu0 0
        %902 = vmatpush.bf16.xpose.msra.mxu0 0
        %903 = vmatpush.bf16.xpose.msra.mxu0 0
        %904 = vmatpush.bf16.xpose.msra.mxu0 0
        %905 = vmatpush.bf16.xpose.msra.mxu0 %v896
        %906 = vmatmul.bf16.gmra.mxu0 %v893
        %v907 = vpop.f32.mrf.mxu0
        %v908 = vadd.f32 0.0, %v907
        %v909 = vpop.f32.mrf.mxu0
        %910 = vdwg.mxu0
        %v912 = vsel %vm891, %v632, 0
        %v915 = vsel %vm891, %v762, 0
        %917 = vmatpush.bf16.xpose.msra.mxu0 0
        %918 = vmatpush.bf16.xpose.msra.mxu0 0
        %919 = vmatpush.bf16.xpose.msra.mxu0 0
        %920 = vmatpush.bf16.xpose.msra.mxu0 0
        %921 = vmatpush.bf16.xpose.msra.mxu0 0
        %922 = vmatpush.bf16.xpose.msra.mxu0 0
        %923 = vmatpush.bf16.xpose.msra.mxu0 0
        %924 = vmatpush.bf16.xpose.msra.mxu0 %v915
        %925 = vmatmul.bf16.gmra.mxu0 %v912
        %v926 = vpop.f32.mrf.mxu0
        %v927 = vadd.f32 0.0, %v926
        %v928 = vpop.f32.mrf.mxu0
        %929 = vdwg.mxu0
        %v931 = vsel %vm891, %v635, 0
        %v934 = vsel %vm891, %v765, 0
        %936 = vmatpush.bf16.xpose.msra.mxu0 0
        %937 = vmatpush.bf16.xpose.msra.mxu0 0
        %938 = vmatpush.bf16.xpose.msra.mxu0 0
        %939 = vmatpush.bf16.xpose.msra.mxu0 0
        %940 = vmatpush.bf16.xpose.msra.mxu0 0
        %941 = vmatpush.bf16.xpose.msra.mxu0 0
        %942 = vmatpush.bf16.xpose.msra.mxu0 0
        %943 = vmatpush.bf16.xpose.msra.mxu0 %v934
        %944 = vmatmul.bf16.gmra.mxu0 %v931
        %v945 = vpop.f32.mrf.mxu0
        %v946 = vadd.f32 0.0, %v945
        %v947 = vpop.f32.mrf.mxu0
        %948 = vdwg.mxu0
        %v950 = vsel %vm891, %v638, 0
        %v953 = vsel %vm891, %v768, 0
        %955 = vmatpush.bf16.xpose.msra.mxu0 0
        %956 = vmatpush.bf16.xpose.msra.mxu0 0
        %957 = vmatpush.bf16.xpose.msra.mxu0 0
        %958 = vmatpush.bf16.xpose.msra.mxu0 0
        %959 = vmatpush.bf16.xpose.msra.mxu0 0
        %960 = vmatpush.bf16.xpose.msra.mxu0 0
        %961 = vmatpush.bf16.xpose.msra.mxu0 0
        %962 = vmatpush.bf16.xpose.msra.mxu0 %v953
        %963 = vmatmul.bf16.gmra.mxu0 %v950
        %v964 = vpop.f32.mrf.mxu0
        %v965 = vadd.f32 0.0, %v964
        %v966 = vpop.f32.mrf.mxu0
        %967 = vdwg.mxu0
        %v968 = vlaneseq
        %v969 = vshrl.u32 %v968, 7
        %v970 = vlaneseq
        %v971 = vand.u32 %v970, 127
        %vm972 = vcmp.le.s32.totalorder %v971, %v969
        %v973 = vsel %vm972, 1, 0
        %vm974 = vcmp.eq.s32.totalorder %v973, 1
        %v975 = vsel %vm974, %v908, -1e+30
        %v976 = vsel %vm974, %v927, -1e+30
        %v977 = vsel %vm974, %v946, -1e+30
        %v978 = vsel %vm974, %v965, -1e+30
        %v979 = vsel %vm891, %v975, -inf
        %980 = vmax.xlane.f32.xlu0 %v979
        %v981 = vpop.xlane.xlu0 %980
        %v982 = vsel %vm891, %v976, -inf
        %983 = vmax.xlane.f32.xlu0 %v982
        %v984 = vpop.xlane.xlu0 %983
        %v985 = vsel %vm891, %v977, -inf
        %986 = vmax.xlane.f32.xlu0 %v985
        %v987 = vpop.xlane.xlu0 %986
        %v988 = vsel %vm891, %v978, -inf
        %989 = vmax.xlane.f32.xlu0 %v988
        %v990 = vpop.xlane.xlu0 %989
        %v991 = vsub.f32 %v975, %v981
        %v992 = vsub.f32 %v976, %v984
        %v993 = vsub.f32 %v977, %v987
        %v994 = vsub.f32 %v978, %v990
        %v995 = vmul.f32 %v991, 1.442695
        %v996 = vpow.pop %v995
        %v997 = vmul.f32 %v992, 1.442695
        %v998 = vpow.pop %v997
        %v999 = vmul.f32 %v993, 1.442695
        %v1000 = vpow.pop %v999
        %v1001 = vmul.f32 %v994, 1.442695
        %v1002 = vpow.pop %v1001
        %v1003 = vsel %vm891, %v996, 0.0
        %1004 = vadd.xlane.f32.xlu0 %v1003
        %v1005 = vpop.xlane.xlu0 %1004
        %v1006 = vsel %vm891, %v998, 0.0
        %1007 = vadd.xlane.f32.xlu0 %v1006
        %v1008 = vpop.xlane.xlu0 %1007
        %v1009 = vsel %vm891, %v1000, 0.0
        %1010 = vadd.xlane.f32.xlu0 %v1009
        %v1011 = vpop.xlane.xlu0 %1010
        %v1012 = vsel %vm891, %v1002, 0.0
        %1013 = vadd.xlane.f32.xlu0 %v1012
        %v1014 = vpop.xlane.xlu0 %1013
        %v1015 = vpack.c.bf16 %v996, %v996
        %v1016 = vpack.c.bf16 %v998, %v998
        %v1017 = vpack.c.bf16 %v1000, %v1000
        %v1018 = vpack.c.bf16 %v1002, %v1002
        %v1020 = vsel %vm891, %v1015, 0
        %vm1022 = vcmask 1043456
        %v1024 = vsel %vm1022, %v881, 0
        %1026 = vmatpush.bf16.msra.mxu0 0
        %1027 = vmatpush.bf16.msra.mxu0 0
        %1028 = vmatpush.bf16.msra.mxu0 0
        %1029 = vmatpush.bf16.msra.mxu0 0
        %1030 = vmatpush.bf16.msra.mxu0 0
        %1031 = vmatpush.bf16.msra.mxu0 0
        %1032 = vmatpush.bf16.msra.mxu0 0
        %1033 = vmatpush.bf16.msra.mxu0 %v1024
        %1034 = vmatmul.bf16.gmra.mxu0 %v1020
        %v1035 = vpop.f32.mrf.mxu0
        %v1036 = vadd.f32 0.0, %v1035
        %v1037 = vpop.f32.mrf.mxu0
        %1038 = vdwg.mxu0
        %v1040 = vsel %vm891, %v1016, 0
        %v1043 = vsel %vm1022, %v884, 0
        %1045 = vmatpush.bf16.msra.mxu0 0
        %1046 = vmatpush.bf16.msra.mxu0 0
        %1047 = vmatpush.bf16.msra.mxu0 0
        %1048 = vmatpush.bf16.msra.mxu0 0
        %1049 = vmatpush.bf16.msra.mxu0 0
        %1050 = vmatpush.bf16.msra.mxu0 0
        %1051 = vmatpush.bf16.msra.mxu0 0
        %1052 = vmatpush.bf16.msra.mxu0 %v1043
        %1053 = vmatmul.bf16.gmra.mxu0 %v1040
        %v1054 = vpop.f32.mrf.mxu0
        %v1055 = vadd.f32 0.0, %v1054
        %v1056 = vpop.f32.mrf.mxu0
        %1057 = vdwg.mxu0
        %v1059 = vsel %vm891, %v1017, 0
        %v1062 = vsel %vm1022, %v887, 0
        %1064 = vmatpush.bf16.msra.mxu0 0
        %1065 = vmatpush.bf16.msra.mxu0 0
        %1066 = vmatpush.bf16.msra.mxu0 0
        %1067 = vmatpush.bf16.msra.mxu0 0
        %1068 = vmatpush.bf16.msra.mxu0 0
        %1069 = vmatpush.bf16.msra.mxu0 0
        %1070 = vmatpush.bf16.msra.mxu0 0
        %1071 = vmatpush.bf16.msra.mxu0 %v1062
        %1072 = vmatmul.bf16.gmra.mxu0 %v1059
        %v1073 = vpop.f32.mrf.mxu0
        %v1074 = vadd.f32 0.0, %v1073
        %v1075 = vpop.f32.mrf.mxu0
        %1076 = vdwg.mxu0
        %v1078 = vsel %vm891, %v1018, 0
        %v1081 = vsel %vm1022, %v890, 0
        %1083 = vmatpush.bf16.msra.mxu0 0
        %1084 = vmatpush.bf16.msra.mxu0 0
        %1085 = vmatpush.bf16.msra.mxu0 0
        %1086 = vmatpush.bf16.msra.mxu0 0
        %1087 = vmatpush.bf16.msra.mxu0 0
        %1088 = vmatpush.bf16.msra.mxu0 0
        %1089 = vmatpush.bf16.msra.mxu0 0
        %1090 = vmatpush.bf16.msra.mxu0 %v1081
        %1091 = vmatmul.bf16.gmra.mxu0 %v1078
        %v1092 = vpop.f32.mrf.mxu0
        %v1093 = vadd.f32 0.0, %v1092
        %v1094 = vpop.f32.mrf.mxu0
        %1095 = vdwg.mxu0
        %v1096 = vrcp.pop %v1005
        %v1097 = vrcp.pop %v1008
        %v1098 = vrcp.pop %v1011
        %v1099 = vrcp.pop %v1014
        %v1100 = vmul.f32 %v1036, %v1096
        %v1101 = vmul.f32 %v1055, %v1097
        %v1102 = vmul.f32 %v1074, %v1098
        %v1103 = vmul.f32 %v1093, %v1099
        %v1104 = vpack.c.bf16 %v1100, %v1100
        %v1105 = vpack.c.bf16 %v1101, %v1101
        %v1106 = vpack.c.bf16 %v1102, %v1102
        %v1107 = vpack.c.bf16 %v1103, %v1103
        %v1110 = vpack.i.b16 %v1105, %v1104
        %v1111 = vshrl.u32 %v1104, 16
        %v1112 = vshrl.u32 %v1105, 16
        %v1113 = vpack.i.b16 %v1112, %v1111
        %v1116 = vpack.i.b16 %v1107, %v1106
        %v1117 = vshrl.u32 %v1106, 16
        %v1118 = vshrl.u32 %v1107, 16
        %v1119 = vpack.i.b16 %v1118, %v1117
        %v1122 = vunpack.c.l.s4 1983009808
        %v1123 = vunpack.c.0.s8 %v1122
        %v1124 = vperm.slane %v1110, %v1123
        %v1127 = vunpack.c.l.s4 1983009808
        %v1128 = vunpack.c.0.s8 %v1127
        %v1129 = vperm.slane %v1116, %v1128
        %v1130 = vrot.slane %v1129, 4
        %v1131 = vsel %vm547, %v1130, %v1124
        %v1132 = vrot.slane %v1124, 4
        %v1133 = vsel %vm547, %v1129, %v1132
        %v1135 = vunpack.c.l.s4 1934713408
        %v1136 = vunpack.c.0.s8 %v1135
        %v1137 = vperm.slane %v1131, %v1136
        %v1139 = vunpack.c.l.s4 1934713408
        %v1140 = vunpack.c.0.s8 %v1139
        %v1141 = vperm.slane %v1133, %v1140
        %v1142 = vrot.slane %v1137, 4
        %v1143 = vsel %vm547, 0, %v1142
        %v1144 = vrot.slane %v1141, 4
        %v1145 = vsel %vm547, 0, %v1144
        %v1148 = vunpack.c.l.s4 1983009808
        %v1149 = vunpack.c.0.s8 %v1148
        %v1150 = vperm.slane %v1113, %v1149
        %v1153 = vunpack.c.l.s4 1983009808
        %v1154 = vunpack.c.0.s8 %v1153
        %v1155 = vperm.slane %v1119, %v1154
        %v1156 = vrot.slane %v1155, 4
        %v1157 = vsel %vm547, %v1156, %v1150
        %v1158 = vrot.slane %v1150, 4
        %v1159 = vsel %vm547, %v1155, %v1158
        %v1161 = vunpack.c.l.s4 1934713408
        %v1162 = vunpack.c.0.s8 %v1161
        %v1163 = vperm.slane %v1157, %v1162
        %v1165 = vunpack.c.l.s4 1934713408
        %v1166 = vunpack.c.0.s8 %v1165
        %v1167 = vperm.slane %v1159, %v1166
        %v1168 = vrot.slane %v1163, 4
        %v1169 = vsel %vm547, 0, %v1168
        %v1170 = vrot.slane %v1167, 4
        %v1171 = vsel %vm547, 0, %v1170
        %v1172 = vsel %vm547, %v1144, %v1137
        %v1174 = vunpack.c.l.s4 1983009808
        %v1175 = vunpack.c.0.s8 %v1174
        %v1176 = vperm.slane %v1172, %v1175
        %v1177 = vrot.slane %v1145, 4
        %v1178 = vsel %vm547, %v1177, %v1143
        %v1180 = vunpack.c.l.s4 1983009808
        %v1181 = vunpack.c.0.s8 %v1180
        %v1182 = vperm.slane %v1178, %v1181
        %v1183 = vrot.slane %v1182, 4
        %v1184 = vsel %vm547, %v1183, %v1176
        %v1186 = vunpack.c.l.s4 1934713408
        %v1187 = vunpack.c.0.s8 %v1186
        %v1188 = vperm.slane %v1184, %v1187
        %v1189 = vrot.slane %v1188, 4
        %v1190 = vsel %vm547, 0, %v1189
        %v1191 = vsel %vm547, %v1170, %v1163
        %v1193 = vunpack.c.l.s4 1983009808
        %v1194 = vunpack.c.0.s8 %v1193
        %v1195 = vperm.slane %v1191, %v1194
        %v1196 = vrot.slane %v1171, 4
        %v1197 = vsel %vm547, %v1196, %v1169
        %v1199 = vunpack.c.l.s4 1983009808
        %v1200 = vunpack.c.0.s8 %v1199
        %v1201 = vperm.slane %v1197, %v1200
        %v1202 = vrot.slane %v1201, 4
        %v1203 = vsel %vm547, %v1202, %v1195
        %v1205 = vunpack.c.l.s4 1934713408
        %v1206 = vunpack.c.0.s8 %v1205
        %v1207 = vperm.slane %v1203, %v1206
        %v1208 = vrot.slane %v1207, 4
        %v1209 = vsel %vm547, 0, %v1208
        %v1212 = vpack.i.b16 %v1207, %v1188
        %v1213 = vshrl.u32 %v1188, 16
        %v1214 = vshrl.u32 %v1207, 16
        %v1215 = vpack.i.b16 %v1214, %v1213
        %v1218 = vpack.i.b16 %v1209, %v1190
        %v1219 = vshrl.u32 %v1190, 16
        %v1220 = vshrl.u32 %v1209, 16
        %v1221 = vpack.i.b16 %v1220, %v1219
        %v1222 = vunpack.c.l.b16 %v1215
        %v1223 = vpack.c.b16 %v1222, %v1222
        %1224 = vrot.lane.b32.xlu0 %v1223, 8
        %v1225 = vpop.permute.xlu0 %1224
        %v1226 = vunpack.c.l.b16 %v1218
        %v1227 = vpack.c.b16 %v1226, %v1226
        %1228 = vrot.lane.b32.xlu0 %v1227, 16
        %v1229 = vpop.permute.xlu0 %1228
        %v1230 = vunpack.c.l.b16 %v1221
        %v1231 = vpack.c.b16 %v1230, %v1230
        %1232 = vrot.lane.b32.xlu0 %v1231, 24
        %v1233 = vpop.permute.xlu0 %1232
        %v1236 = vsel %vm891, %v1212, %v1225
        %vm1237 = vcmask 130048
        %v1239 = vsel %vm1237, %v1236, %v1229
        %vm1240 = vcmask 195584
        %v1242 = vsel %vm1240, %v1239, %v1233
        %v1243 = vld [vmem:[%s5] sm:$0xf]
        %v1244 = vld [vmem:[%s5 + $0x4] sm:$0xf]
        %v1245 = vld [vmem:[%s5 + $0x8] sm:$0xf]
        %v1246 = vld [vmem:[%s5 + $0xc] sm:$0xf]
        %v1251 = vunpack.c.l.b16 %v1243
        %v1252 = vunpack.c.l.b16 %v1244
        %v1253 = vunpack.c.l.b16 %v1245
        %v1254 = vunpack.c.l.b16 %v1246
        %v1255 = vpack.c.b16 %v1252, %v1251
        %v1256 = vpack.c.b16 %v1254, %v1253
        %v1259 = vsel %vm440, %v1242, 0
        %1261 = vmatpush.bf16.msra.mxu0 0
        %1262 = vmatpush.bf16.msra.mxu0 0
        %1263 = vmatpush.bf16.msra.mxu0 0
        %1264 = vmatpush.bf16.msra.mxu0 0
        %1265 = vmatpush.bf16.msra.mxu0 0
        %1266 = vmatpush.bf16.msra.mxu0 0
        %1267 = vmatpush.bf16.msra.mxu0 %v1256
        %1268 = vmatpush.bf16.msra.mxu0 %v1255
        %1269 = vmatmul.bf16.gmra.mxu0 %v1259
        %v1270 = vpop.f32.mrf.mxu0
        %v1271 = vadd.f32 0.0, %v1270
        %v1272 = vpop.f32.mrf.mxu0
        %1273 = vdwg.mxu0
        %v1274 = vadd.f32 %v437, %v1271
        %v1275 = vld [vmem:[%s6] sm:$0x1]
        %v1277 = vperm.slane %v1275, 0
        %v1279 = vadd.f32 %v1274, %v1277
        %v1280 = vld [vmem:[%s7] sm:$0x1]
        %v1281 = vld [vmem:[%s8] sm:$0x1]
        %v1282 = vsel %vm440, %v1279, 0.0
        %1283 = vadd.xlane.f32.xlu0 %v1282
        %v1284 = vpop.xlane.xlu0 %1283
        %v1285 = vmul.f32 %v1284, %v450
        %v1286 = vsub.f32 %v1279, %v1285
        %v1287 = vmul.f32 %v1286, %v1286
        %v1288 = vsel %vm440, %v1287, 0.0
        %1289 = vadd.xlane.f32.xlu0 %v1288
        %v1290 = vpop.xlane.xlu0 %1289
        %v1291 = vmul.f32 %v1290, %v450
        %v1292 = vadd.f32 %v1291, 1e-05
        %v1293 = vrsqrt.pop %v1292
        %v1294 = vmul.f32 %v1293, %v1292
        %v1295 = vmul.f32 %v1294, %v1293
        %v1296 = vmul.f32 0.5, %v1295
        %v1297 = vsub.f32 1.5, %v1296
        %v1298 = vmul.f32 %v1293, %v1297
        %vm1299 = vweird.f32 %v1292
        %vm1300 = vweird.f32 %v1293
        %vm1301 = vmor %vm1299, %vm1300
        %v1302 = vsel %vm1301, %v1293, %v1298
        %v1303 = vmul.f32 %v1286, %v1302
        %v1305 = vperm.slane %v1280, 0
        %v1307 = vmul.f32 %v1303, %v1305
        %v1309 = vperm.slane %v1281, 0
        %v1311 = vadd.f32 %v1307, %v1309
        %v1312 = vpack.c.bf16 %v1311, %v1311
        %v1313 = vld [vmem:[%s10] sm:$0x1]
        %v1314 = vld [vmem:[%s9] sm:$0xf]
        %v1315 = vld [vmem:[%s9 + $0x4] sm:$0xf]
        %v1316 = vld [vmem:[%s9 + $0x8] sm:$0xf]
        %v1317 = vld [vmem:[%s9 + $0xc] sm:$0xf]
        %v1319 = vperm.slane %v1313, 0
        %v1325 = vunpack.c.l.b16 %v1314
        %v1326 = vunpack.c.l.b16 %v1315
        %v1327 = vunpack.c.l.b16 %v1316
        %v1328 = vunpack.c.l.b16 %v1317
        %v1329 = vpack.c.b16 %v1326, %v1325
        %v1330 = vpack.c.b16 %v1328, %v1327
        %v1334 = vsel %vm440, %v1312, 0
        %1336 = vmatpush.bf16.msra.mxu0 0
        %1337 = vmatpush.bf16.msra.mxu0 0
        %1338 = vmatpush.bf16.msra.mxu0 0
        %1339 = vmatpush.bf16.msra.mxu0 0
        %1340 = vmatpush.bf16.msra.mxu0 0
        %1341 = vmatpush.bf16.msra.mxu0 0
        %1342 = vmatpush.bf16.msra.mxu0 %v1330
        %1343 = vmatpush.bf16.msra.mxu0 %v1329
        %1344 = vmatmul.bf16.gmra.mxu0 %v1334
        %v1345 = vpop.f32.mrf.mxu0
        %v1346 = vadd.f32 %v1319, %v1345
        %v1347 = vpop.f32.mrf.mxu0
        %1348 = vdwg.mxu0
        %v1349 = vmul.f32 %v1346, 0.5
        %v1350 = vmul.f32 %v1346, 0.044715
        %v1351 = vmul.f32 %v1350, %v1346
        %v1352 = vmul.f32 %v1351, %v1346
        %v1353 = vadd.f32 %v1346, %v1352
        %v1354 = vmul.f32 %v1353, 0.7978846
        %v1355 = vtanh.pop %v1354
        %v1356 = vadd.f32 %v1355, 1.0
        %v1357 = vmul.f32 %v1349, %v1356
        %v1358 = vpack.c.bf16 %v1357, %v1357
        %v1359 = vld [vmem:[%s11] sm:$0xf]
        %v1360 = vld [vmem:[%s11 + $0x4] sm:$0xf]
        %v1361 = vld [vmem:[%s11 + $0x8] sm:$0xf]
        %v1362 = vld [vmem:[%s11 + $0xc] sm:$0xf]
        %v1363 = vld [vmem:[%s11 + $0x10] sm:$0xf]
        %v1364 = vld [vmem:[%s11 + $0x14] sm:$0xf]
        %v1365 = vld [vmem:[%s11 + $0x18] sm:$0xf]
        %v1366 = vld [vmem:[%s11 + $0x1c] sm:$0xf]
        %v1367 = vld [vmem:[%s11 + $0x20] sm:$0xf]
        %v1368 = vld [vmem:[%s11 + $0x24] sm:$0xf]
        %v1369 = vld [vmem:[%s11 + $0x28] sm:$0xf]
        %v1370 = vld [vmem:[%s11 + $0x2c] sm:$0xf]
        %v1371 = vld [vmem:[%s11 + $0x30] sm:$0xf]
        %v1372 = vld [vmem:[%s11 + $0x34] sm:$0xf]
        %v1373 = vld [vmem:[%s11 + $0x38] sm:$0xf]
        %v1374 = vld [vmem:[%s11 + $0x3c] sm:$0xf]
        %v1391 = vunpack.c.l.b16 %v1359
        %v1392 = vunpack.c.l.b16 %v1360
        %v1393 = vunpack.c.l.b16 %v1361
        %v1394 = vunpack.c.l.b16 %v1362
        %v1395 = vunpack.c.l.b16 %v1363
        %v1396 = vunpack.c.l.b16 %v1364
        %v1397 = vunpack.c.l.b16 %v1365
        %v1398 = vunpack.c.l.b16 %v1366
        %v1399 = vunpack.c.l.b16 %v1367
        %v1400 = vunpack.c.l.b16 %v1368
        %v1401 = vunpack.c.l.b16 %v1369
        %v1402 = vunpack.c.l.b16 %v1370
        %v1403 = vunpack.c.l.b16 %v1371
        %v1404 = vunpack.c.l.b16 %v1372
        %v1405 = vunpack.c.l.b16 %v1373
        %v1406 = vunpack.c.l.b16 %v1374
        %v1407 = vpack.c.b16 %v1392, %v1391
        %v1408 = vpack.c.b16 %v1394, %v1393
        %v1409 = vpack.c.b16 %v1396, %v1395
        %v1410 = vpack.c.b16 %v1398, %v1397
        %v1411 = vpack.c.b16 %v1400, %v1399
        %v1412 = vpack.c.b16 %v1402, %v1401
        %v1413 = vpack.c.b16 %v1404, %v1403
        %v1414 = vpack.c.b16 %v1406, %v1405
        %1423 = vmatpush.bf16.msra.mxu0 %v1414
        %1424 = vmatpush.bf16.msra.mxu0 %v1413
        %1425 = vmatpush.bf16.msra.mxu0 %v1412
        %1426 = vmatpush.bf16.msra.mxu0 %v1411
        %1427 = vmatpush.bf16.msra.mxu0 %v1410
        %1428 = vmatpush.bf16.msra.mxu0 %v1409
        %1429 = vmatpush.bf16.msra.mxu0 %v1408
        %1430 = vmatpush.bf16.msra.mxu0 %v1407
        %1431 = vmatmul.bf16.gmra.mxu0 %v1358
        %v1432 = vpop.f32.mrf.mxu0
        %v1433 = vadd.f32 0.0, %v1432
        %v1434 = vpop.f32.mrf.mxu0
        %1435 = vdwg.mxu0
        %v1436 = vadd.f32 %v1279, %v1433
        %v1437 = vld [vmem:[%s12] sm:$0x1]
        %v1439 = vperm.slane %v1437, 0
        %v1441 = vadd.f32 %v1436, %v1439
        %1442 = vst.msk [vmem:[%s431] sm:$0xff] %vm440, %v1441
        %s1443 = sand.u32 %s313, 1
        %s1444 = scalar_lea.sflag [#allocation3], %s1443
        %s1445 = sand.u32 %s313, 1
        %s1446 = smul.addr %s1445, 8
        %s1447 = scalar_lea.vmem [#allocation2], %s1446
        // Predicated region
        $region73: #{tpu_custom_call.1} parent=71 // pred_check
          %p1448 = pneg %p323
        $region74: #{tpu_custom_call.1} parent=71 // pred_check_branch
          %1450 = sbr.rel (%p1448) target = $region76
        $region75: #{tpu_custom_call.1} parent=71 // pred_region
          %1452 = vsyncadd %s1444, 0
          %s1453 = smul.addr %s27, 8
          %s1454 = scalar_lea.hbm %s13, %s1453
          %s1456 = sshll.u32 %s1447, 4
          %s1457 = int_to_ptr.vmem [resolvable:$true] %s1456
          %s1458 = sshll.u32 %s1454, 4
          %s1459 = int_to_ptr.hbm [resolvable:$true] %s1458
          %1461 = dma.vmem_to_hbm [thread:$0]  %s1457, 128, %s1459, %s1444
        $region76: #{tpu_custom_call.1} parent=71 // pred_fallthru
          _
      $region72: #{tpu_custom_call.1} parent=5 // pred_fallthru
        _
      %p1462 = scmp.le.s32.totalorder 2, %s22
      // Predicated region
      $region77: #{tpu_custom_call.1} parent=5 // pred_check
        %p1463 = pneg %p1462
      $region78: #{tpu_custom_call.1} parent=5 // pred_check_branch
        %1465 = sbr.rel (%p1463) target = $region80
      $region79: #{tpu_custom_call.1} parent=5 // pred_region
        %s1466 = ssub.s32 %s22, 2
        // Predicated region
        $region81: #{tpu_custom_call.1} parent=79 // pred_check
          %p1467 = pneg %p329
        $region82: #{tpu_custom_call.1} parent=79 // pred_check_branch
          %1469 = sbr.rel (%p1467) target = $region84
        $region83: #{tpu_custom_call.1} parent=79 // pred_region
          %s1470 = sand.u32 %s314, 1
          %s1471 = scalar_lea.sflag [#allocation3], %s1470
          %s1472 = sand.u32 %s314, 1
          %s1473 = smul.addr %s1472, 8
          %s1474 = scalar_lea.vmem [#allocation2], %s1473
          %1476 = dma.done %s1471, 128
        $region84: #{tpu_custom_call.1} parent=79 // pred_fallthru
          _
      $region80: #{tpu_custom_call.1} parent=5 // pred_fallthru
        _
    $region6: #{tpu_custom_call.1} parent=1 // loop_footer
      %s26 = sadd.s32 1, %s22
    $region7: #{tpu_custom_call.1} parent=1 // loop_footer_branch
      %21 = sbr.rel target = $region3
    $region8: #{tpu_custom_call.1} parent=1 // loop_exit
      _
    %1477 = vsyncpa [#allocation3], 1
    %s1478 = scalar_lea.sflag [#allocation3], 1
    %1479 = vsyncpa %s1478, 1

</llo_original>
